<compile_context>
chip_gen: v7x
topology: tpu7x:2x2x1
jax: 0.10.0
libtpu: 0.0.40
codegen_flags: <defaults>
</compile_context>

<pallas_src>
import functools

import jax
import jax.numpy as jnp
from jax.experimental import pallas as pl
from jax.experimental.pallas import tpu as pltpu

LANE = 128


def _act(z):
    # activation: GELU (tanh approximation); gelu(0) == 0 so zero padding is preserved.
    return jax.nn.gelu(z, approximate=True)


def _round_up(n, m):
    return ((n + m - 1) // m) * m


def _activation_dtype():
    """bf16 elementwise on chips with a bf16 VPU/EUP (v6e, v7x); f32 elsewhere."""
    try:
        kind = jax.devices()[0].device_kind.lower()
    except Exception:
        return jnp.float32
    if "tpu" not in kind:
        return jnp.float32
    for old in ("v2", "v3", "v4", "v5"):
        if old in kind:
            return jnp.float32
    return jnp.bfloat16


# ----------------------------------------------------------------------------- kernel
def fourier_mlp_kernel(t_ref, x_ref, coeff2_ref, phase2_ref,
                       w_te1_ref, b_te1_ref,
                       w_te2_ref, w_in_ref, b2f_ref,
                       w_h1_ref, b_h1_ref, w_h2_ref, b_h2_ref,
                       w_out_ref, b_out_ref, o_ref, *, act_dtype):
    f32 = jnp.float32
    bf16 = jnp.bfloat16
    cdt = act_dtype                                        # bf16 on v6e/v7x, f32 on v5e

    t = t_ref[...]                                          # (tb, 1) f32

    # --- Fourier features: [sin | cos] via a single sin over 2*CP lanes -------------
    # cos(a) == sin(a + pi/2); padded columns have coeff = phase = 0 -> sin(0) = 0.
    # arg / sin stay f32: the argument magnitude reaches ~100, bf16 would be garbage.
    arg = coeff2_ref[...] * t + phase2_ref[...]             # (tb, 2*CP) f32
    sincos = jnp.sin(arg).astype(bf16)                      # (tb, 2*CP) bf16

    def dense(h_bf16, w_ref, b_ref):
        acc = jnp.dot(h_bf16, w_ref[...], preferred_element_type=f32)
        return acc.astype(cdt) + b_ref[...].astype(cdt)

    # --- TimeEmbed hidden Linear(2C -> C): one K=2*CP MXU pass -----------------------
    h_t = _act(dense(sincos, w_te1_ref, b_te1_ref))         # (tb, CP)

    # --- embed = (h_t @ w_te2 + b_te2) + (x @ w_in + b_in) ---------------------------
    acc = (jnp.dot(h_t.astype(bf16), w_te2_ref[...], preferred_element_type=f32)
           + jnp.dot(x_ref[...], w_in_ref[...], preferred_element_type=f32))
    embed = acc.astype(cdt) + b2f_ref[...].astype(cdt)      # (tb, CP)

    # --- trunk -----------------------------------------------------------------------
    e = dense(_act(embed).astype(bf16), w_h1_ref, b_h1_ref)
    e = dense(_act(e).astype(bf16), w_h2_ref, b_h2_ref)
    out = jnp.dot(_act(e).astype(bf16), w_out_ref[...],
                  preferred_element_type=f32) + b_out_ref[...]   # (tb, OUTP) f32
    o_ref[...] = out.astype(o_ref.dtype)


# ----------------------------------------------------------------------------- packing
def pack_params(p, dim, channels, dim_out):
    """Pad/pack the natural (pre-transposed, PyTorch-shaped) params for the kernel."""
    C = channels
    CP = _round_up(max(C, LANE), LANE)          # padded channel width (lane-dense)
    OUTP = _round_up(max(dim_out, LANE), LANE)
    DIMP = _round_up(max(dim, 16), 16)          # x padded to a bf16-sublane multiple
    f32, bf16 = jnp.float32, jnp.bfloat16

    def pad2(a, rows, cols, dtype):
        z = jnp.zeros((rows, cols), dtype)
        return z.at[:a.shape[0], :a.shape[1]].set(a.astype(dtype))

    # Fourier coeff/phase packed as [sin-half | cos-half]; cos(x) == sin(x + pi/2).
    # Padded columns keep coeff = phase = 0 so sin evaluates to exactly 0 there.
    coeff2 = jnp.zeros((1, 2 * CP), f32)
    coeff2 = coeff2.at[0, :C].set(p["coeff"][0].astype(f32))
    coeff2 = coeff2.at[0, CP:CP + C].set(p["coeff"][0].astype(f32))
    phase2 = jnp.zeros((1, 2 * CP), f32)
    phase2 = phase2.at[0, :C].set(p["phase"][0].astype(f32))
    phase2 = phase2.at[0, CP:CP + C].set((p["phase"][0] + jnp.pi / 2).astype(f32))

    # TimeEmbed hidden weight (2C -> C): sin rows at [0:C], cos rows at [CP:CP+C].
    w_te1 = jnp.zeros((2 * CP, CP), bf16)
    w_te1 = w_te1.at[:C, :C].set(p["w_te1"][:C, :].astype(bf16))
    w_te1 = w_te1.at[CP:CP + C, :C].set(p["w_te1"][C:, :].astype(bf16))
    b_te1 = pad2(p["b_te1"], 1, CP, f32)

    w_te2 = pad2(p["w_te2"], CP, CP, bf16)       # TimeEmbed out  (C -> C)
    w_in = pad2(p["w_in"], DIMP, CP, bf16)       # input embed    (dim -> C), tiny K
    b2f = pad2(p["b_te2"] + p["b_in"], 1, CP, f32)
    w_h1 = pad2(p["w_h1"], CP, CP, bf16)
    b_h1 = pad2(p["b_h1"], 1, CP, f32)
    w_h2 = pad2(p["w_h2"], CP, CP, bf16)
    b_h2 = pad2(p["b_h2"], 1, CP, f32)
    w_out = pad2(p["w_out"], CP, OUTP, bf16)     # lane-dense output slab
    b_out = pad2(p["b_out"], 1, OUTP, f32)

    packed = dict(coeff2=coeff2, phase2=phase2, w_te1=w_te1, b_te1=b_te1,
                  w_te2=w_te2, w_in=w_in, b2f=b2f,
                  w_h1=w_h1, b_h1=b_h1, w_h2=w_h2, b_h2=b_h2,
                  w_out=w_out, b_out=b_out)
    meta = dict(dim=dim, channels=C, dim_out=dim_out, CP=CP, OUTP=OUTP, DIMP=DIMP)
    return packed, meta


_PACKED_ORDER = ["coeff2", "phase2", "w_te1", "b_te1", "w_te2", "w_in", "b2f",
                 "w_h1", "b_h1", "w_h2", "b_h2", "w_out", "b_out"]


# ----------------------------------------------------------------------------- wrapper
def fourier_mlp_forward(t, x, packed, meta, *, tb=None, out_dtype=jnp.float32):
    f32, bf16 = jnp.float32, jnp.bfloat16
    dim, dim_out = meta["dim"], meta["dim_out"]
    OUTP, DIMP = meta["OUTP"], meta["DIMP"]
    B = x.shape[0]
    assert x.shape[1] == dim
    # t must have 1 or B elements (same contract as the PyTorch module)
    t = jnp.broadcast_to(jnp.reshape(t, (-1, 1)).astype(f32), (B, 1))

    # Batch tile: aim for >=2 grid steps (v7x megacore sharding + pipeline overlap),
    # cap at 256 so (tb, 128)/(tb, 256) intermediates stay well below the 64-vreg file.
    if tb is None:
        tb = max(8, min(256, _round_up(-(-B // 2), 8)))
    tb = _round_up(tb, 8)
    B_pad = _round_up(B, tb)

    t_pad = jnp.zeros((B_pad, 1), f32).at[:B, :].set(t)
    # x stays a narrow (B_pad, DIMP) bf16 stream — no wide zero-padded scatter slab.
    x_pad = jnp.zeros((B_pad, DIMP), bf16).at[:B, :dim].set(x.astype(bf16))

    act_dtype = _activation_dtype()
    param_arrays = [packed[k] for k in _PACKED_ORDER]

    row = lambda cols: pl.BlockSpec((tb, cols), lambda i: (i, 0))
    full = lambda shp: pl.BlockSpec(shp, lambda i: (0, 0))   # weights stay VMEM-resident

    out = pl.pallas_call(
        functools.partial(fourier_mlp_kernel, act_dtype=act_dtype),
        out_shape=jax.ShapeDtypeStruct((B_pad, OUTP), bf16),
        grid=(B_pad // tb,),
        in_specs=[row(1), row(DIMP)] + [full(p.shape) for p in param_arrays],
        out_specs=row(OUTP),
        compiler_params=pltpu.CompilerParams(
            dimension_semantics=("parallel",),
            vmem_limit_bytes=32 * 1024 * 1024),
    )(t_pad, x_pad, *param_arrays)
    return out[:B, :dim_out].astype(out_dtype)


# ----------------------------------------------------------------------------- params / reference
def init_params(key, dim, channels, dim_out=None):
    """Deterministic synthetic parameters matching the PyTorch module shapes.
    All nn.Linear weights stored pre-transposed as (in, out); biases as (1, out)."""
    dim_out = dim_out or dim
    C = channels
    keys = jax.random.split(key, 13)

    def linear(kw, kb, fan_in, fan_out):
        bound = 1.0 / float(fan_in) ** 0.5   # PyTorch default Linear init range
        w = jax.random.uniform(kw, (fan_in, fan_out), jnp.float32, -bound, bound)
        b = jax.random.uniform(kb, (1, fan_out), jnp.float32, -bound, bound)
        return w, b

    coeff = jnp.linspace(0.1, 100.0, C, dtype=jnp.float32).reshape(1, C)
    phase = jax.random.normal(keys[0], (1, C), jnp.float32)
    w_te1, b_te1 = linear(keys[1], keys[2], 2 * C, C)      # TimeEmbed hidden (2C->C)
    w_te2, b_te2 = linear(keys[3], keys[4], C, C)          # TimeEmbed out    (C->C)
    w_in,  b_in  = linear(keys[5], keys[6], dim, C)        # input_embed      (dim->C)
    w_h1,  b_h1  = linear(keys[7], keys[8], C, C)          # hidden 1         (C->C)
    w_h2,  b_h2  = linear(keys[9], keys[10], C, C)         # hidden 2         (C->C)
    w_out, b_out = linear(keys[11], keys[12], C, dim_out)  # out_layer        (C->dim)
    return dict(coeff=coeff, phase=phase,
                w_te1=w_te1, b_te1=b_te1, w_te2=w_te2, b_te2=b_te2,
                w_in=w_in, b_in=b_in, w_h1=w_h1, b_h1=b_h1,
                w_h2=w_h2, b_h2=b_h2, w_out=w_out, b_out=b_out)


def fourier_mlp_ref(t, x, p):
    """Pure-JAX f32 reference of the PyTorch forward."""
    B = x.shape[0]
    t = jnp.broadcast_to(jnp.reshape(t, (-1, 1)).astype(jnp.float32), (B, 1))
    arg = p["coeff"] * t + p["phase"]
    emb = jnp.concatenate([jnp.sin(arg), jnp.cos(arg)], axis=1)
    h = _act(emb @ p["w_te1"] + p["b_te1"])
    embed_t = h @ p["w_te2"] + p["b_te2"]
    embed_x = x @ p["w_in"] + p["b_in"]
    e = embed_x + embed_t
    e = _act(e) @ p["w_h1"] + p["b_h1"]
    e = _act(e) @ p["w_h2"] + p["b_h2"]
    return _act(e) @ p["w_out"] + p["b_out"]


if __name__ == "__main__":
    DIM, CHANNELS, BATCH = 4, 64, 32

    key = jax.random.PRNGKey(0)
    k_params, k_x, k_t = jax.random.split(key, 3)
    params = init_params(k_params, DIM, CHANNELS)
    packed, meta = pack_params(params, DIM, CHANNELS, DIM)

    x = jax.random.normal(k_x, (BATCH, DIM), jnp.float32)
    t = jax.random.uniform(k_t, (BATCH,), jnp.float32)

    out = jax.block_until_ready(fourier_mlp_forward(t, x, packed, meta))
    ref = jax.block_until_ready(fourier_mlp_ref(t, x, params))

    assert out.shape == (BATCH, DIM)
    # bf16 matmul inputs + (on v6e/v7x) bf16 activations + bf16 output slab,
    # f32 MXU accumulation -> loosened tolerance vs the f32 reference.
    assert jnp.allclose(out, ref, atol=5e-2, rtol=5e-2), "mismatch vs reference"

    print("KERNEL_OK")
</pallas_src>

<mosaic_0001>
module attributes {stable_mosaic.version = 11 : i64} {
  func.func @fourier_mlp_kernel(%arg0: i32, %arg1: memref<16x1xf32, #tpu.memory_space<vmem>>, %arg2: memref<16x16xbf16, #tpu.memory_space<vmem>>, %arg3: memref<1x256xf32, #tpu.memory_space<vmem>>, %arg4: memref<1x256xf32, #tpu.memory_space<vmem>>, %arg5: memref<256x128xbf16, #tpu.memory_space<vmem>>, %arg6: memref<1x128xf32, #tpu.memory_space<vmem>>, %arg7: memref<128x128xbf16, #tpu.memory_space<vmem>>, %arg8: memref<16x128xbf16, #tpu.memory_space<vmem>>, %arg9: memref<1x128xf32, #tpu.memory_space<vmem>>, %arg10: memref<128x128xbf16, #tpu.memory_space<vmem>>, %arg11: memref<1x128xf32, #tpu.memory_space<vmem>>, %arg12: memref<128x128xbf16, #tpu.memory_space<vmem>>, %arg13: memref<1x128xf32, #tpu.memory_space<vmem>>, %arg14: memref<128x128xbf16, #tpu.memory_space<vmem>>, %arg15: memref<1x128xf32, #tpu.memory_space<vmem>>, %arg16: memref<16x128xbf16, #tpu.memory_space<vmem>>) attributes {dimension_semantics = [#tpu.dimension_semantics<parallel>], iteration_bounds = array<i64: 2>, scalar_prefetch = 0 : i64, scratch_operands = 0 : i64, tpu.core_type = #tpu.core_type<tc>, window_params = [{transform_indices = @transform_0, window_bounds = array<i64: 16, 1>}, {transform_indices = @transform_1, window_bounds = array<i64: 16, 16>}, {pipeline_mode = #tpu.pipeline_mode<synchronous>, transform_indices = @transform_2, window_bounds = array<i64: 1, 256>}, {pipeline_mode = #tpu.pipeline_mode<synchronous>, transform_indices = @transform_3, window_bounds = array<i64: 1, 256>}, {pipeline_mode = #tpu.pipeline_mode<synchronous>, transform_indices = @transform_4, window_bounds = array<i64: 256, 128>}, {pipeline_mode = #tpu.pipeline_mode<synchronous>, transform_indices = @transform_5, window_bounds = array<i64: 1, 128>}, {pipeline_mode = #tpu.pipeline_mode<synchronous>, transform_indices = @transform_6, window_bounds = array<i64: 128, 128>}, {pipeline_mode = #tpu.pipeline_mode<synchronous>, transform_indices = @transform_7, window_bounds = array<i64: 16, 128>}, {pipeline_mode = #tpu.pipeline_mode<synchronous>, transform_indices = @transform_8, window_bounds = array<i64: 1, 128>}, {pipeline_mode = #tpu.pipeline_mode<synchronous>, transform_indices = @transform_9, window_bounds = array<i64: 128, 128>}, {pipeline_mode = #tpu.pipeline_mode<synchronous>, transform_indices = @transform_10, window_bounds = array<i64: 1, 128>}, {pipeline_mode = #tpu.pipeline_mode<synchronous>, transform_indices = @transform_11, window_bounds = array<i64: 128, 128>}, {pipeline_mode = #tpu.pipeline_mode<synchronous>, transform_indices = @transform_12, window_bounds = array<i64: 1, 128>}, {pipeline_mode = #tpu.pipeline_mode<synchronous>, transform_indices = @transform_13, window_bounds = array<i64: 128, 128>}, {pipeline_mode = #tpu.pipeline_mode<synchronous>, transform_indices = @transform_14, window_bounds = array<i64: 1, 128>}, {transform_indices = @transform_15, window_bounds = array<i64: 16, 128>}]} {
    %c0 = arith.constant 0 : index
    %c0_0 = arith.constant 0 : index
    %0 = vector.load %arg1[%c0, %c0_0] : memref<16x1xf32, #tpu.memory_space<vmem>>, vector<16x1xf32>
    %c0_1 = arith.constant 0 : index
    %c0_2 = arith.constant 0 : index
    %1 = vector.load %arg3[%c0_1, %c0_2] : memref<1x256xf32, #tpu.memory_space<vmem>>, vector<1x256xf32>
    %2 = vector.broadcast %1 : vector<1x256xf32> to vector<16x256xf32>
    %3 = vector.broadcast %0 : vector<16x1xf32> to vector<16x256xf32>
    %4 = arith.mulf %2, %3 : vector<16x256xf32>
    %c0_3 = arith.constant 0 : index
    %c0_4 = arith.constant 0 : index
    %5 = vector.load %arg4[%c0_3, %c0_4] : memref<1x256xf32, #tpu.memory_space<vmem>>, vector<1x256xf32>
    %6 = vector.broadcast %5 : vector<1x256xf32> to vector<16x256xf32>
    %7 = arith.addf %4, %6 : vector<16x256xf32>
    %8 = math.sin %7 : vector<16x256xf32>
    %9 = arith.truncf %8 : vector<16x256xf32> to vector<16x256xbf16>
    %c0_5 = arith.constant 0 : index
    %c0_6 = arith.constant 0 : index
    %10 = vector.load %arg5[%c0_5, %c0_6] : memref<256x128xbf16, #tpu.memory_space<vmem>>, vector<256x128xbf16>
    %cst = arith.constant dense<0.000000e+00> : vector<16x128xf32>
    %11 = tpu.matmul %9, %10, %cst {dimension_numbers = #tpu.dot_dimension_numbers<[1], [0], [0], [1], [0, 0, 1, 1], [], []>} : vector<16x256xbf16>, vector<256x128xbf16>, vector<16x128xf32> -> vector<16x128xf32>
    %c0_7 = arith.constant 0 : index
    %c0_8 = arith.constant 0 : index
    %12 = vector.load %arg6[%c0_7, %c0_8] : memref<1x128xf32, #tpu.memory_space<vmem>>, vector<1x128xf32>
    %13 = vector.broadcast %12 : vector<1x128xf32> to vector<16x128xf32>
    %14 = arith.addf %11, %13 : vector<16x128xf32>
    %15 = arith.mulf %14, %14 : vector<16x128xf32>
    %16 = arith.mulf %14, %15 : vector<16x128xf32>
    %cst_9 = arith.constant 4.471500e-02 : f32
    %17 = vector.broadcast %cst_9 : f32 to vector<16x128xf32>
    %18 = arith.mulf %17, %16 : vector<16x128xf32>
    %19 = arith.addf %14, %18 : vector<16x128xf32>
    %cst_10 = arith.constant 0.797884583 : f32
    %20 = vector.broadcast %cst_10 : f32 to vector<16x128xf32>
    %21 = arith.mulf %20, %19 : vector<16x128xf32>
    %22 = math.tanh %21 : vector<16x128xf32>
    %cst_11 = arith.constant 1.000000e+00 : f32
    %23 = vector.broadcast %cst_11 : f32 to vector<16x128xf32>
    %24 = arith.addf %23, %22 : vector<16x128xf32>
    %cst_12 = arith.constant 5.000000e-01 : f32
    %25 = vector.broadcast %cst_12 : f32 to vector<16x128xf32>
    %26 = arith.mulf %25, %24 : vector<16x128xf32>
    %27 = arith.mulf %14, %26 : vector<16x128xf32>
    %28 = arith.truncf %27 : vector<16x128xf32> to vector<16x128xbf16>
    %c0_13 = arith.constant 0 : index
    %c0_14 = arith.constant 0 : index
    %29 = vector.load %arg7[%c0_13, %c0_14] : memref<128x128xbf16, #tpu.memory_space<vmem>>, vector<128x128xbf16>
    %cst_15 = arith.constant dense<0.000000e+00> : vector<16x128xf32>
    %30 = tpu.matmul %28, %29, %cst_15 {dimension_numbers = #tpu.dot_dimension_numbers<[1], [0], [0], [1], [0, 0, 1, 1], [], []>} : vector<16x128xbf16>, vector<128x128xbf16>, vector<16x128xf32> -> vector<16x128xf32>
    %c0_16 = arith.constant 0 : index
    %c0_17 = arith.constant 0 : index
    %31 = vector.load %arg2[%c0_16, %c0_17] : memref<16x16xbf16, #tpu.memory_space<vmem>>, vector<16x16xbf16>
    %c0_18 = arith.constant 0 : index
    %c0_19 = arith.constant 0 : index
    %32 = vector.load %arg8[%c0_18, %c0_19] : memref<16x128xbf16, #tpu.memory_space<vmem>>, vector<16x128xbf16>
    %cst_20 = arith.constant dense<0.000000e+00> : vector<16x128xf32>
    %33 = tpu.matmul %31, %32, %cst_20 {dimension_numbers = #tpu.dot_dimension_numbers<[1], [0], [0], [1], [0, 0, 1, 1], [], []>} : vector<16x16xbf16>, vector<16x128xbf16>, vector<16x128xf32> -> vector<16x128xf32>
    %34 = arith.addf %30, %33 : vector<16x128xf32>
    %c0_21 = arith.constant 0 : index
    %c0_22 = arith.constant 0 : index
    %35 = vector.load %arg9[%c0_21, %c0_22] : memref<1x128xf32, #tpu.memory_space<vmem>>, vector<1x128xf32>
    %36 = vector.broadcast %35 : vector<1x128xf32> to vector<16x128xf32>
    %37 = arith.addf %34, %36 : vector<16x128xf32>
    %38 = arith.mulf %37, %37 : vector<16x128xf32>
    %39 = arith.mulf %37, %38 : vector<16x128xf32>
    %cst_23 = arith.constant 4.471500e-02 : f32
    %40 = vector.broadcast %cst_23 : f32 to vector<16x128xf32>
    %41 = arith.mulf %40, %39 : vector<16x128xf32>
    %42 = arith.addf %37, %41 : vector<16x128xf32>
    %cst_24 = arith.constant 0.797884583 : f32
    %43 = vector.broadcast %cst_24 : f32 to vector<16x128xf32>
    %44 = arith.mulf %43, %42 : vector<16x128xf32>
    %45 = math.tanh %44 : vector<16x128xf32>
    %cst_25 = arith.constant 1.000000e+00 : f32
    %46 = vector.broadcast %cst_25 : f32 to vector<16x128xf32>
    %47 = arith.addf %46, %45 : vector<16x128xf32>
    %cst_26 = arith.constant 5.000000e-01 : f32
    %48 = vector.broadcast %cst_26 : f32 to vector<16x128xf32>
    %49 = arith.mulf %48, %47 : vector<16x128xf32>
    %50 = arith.mulf %37, %49 : vector<16x128xf32>
    %51 = arith.truncf %50 : vector<16x128xf32> to vector<16x128xbf16>
    %c0_27 = arith.constant 0 : index
    %c0_28 = arith.constant 0 : index
    %52 = vector.load %arg10[%c0_27, %c0_28] : memref<128x128xbf16, #tpu.memory_space<vmem>>, vector<128x128xbf16>
    %cst_29 = arith.constant dense<0.000000e+00> : vector<16x128xf32>
    %53 = tpu.matmul %51, %52, %cst_29 {dimension_numbers = #tpu.dot_dimension_numbers<[1], [0], [0], [1], [0, 0, 1, 1], [], []>} : vector<16x128xbf16>, vector<128x128xbf16>, vector<16x128xf32> -> vector<16x128xf32>
    %c0_30 = arith.constant 0 : index
    %c0_31 = arith.constant 0 : index
    %54 = vector.load %arg11[%c0_30, %c0_31] : memref<1x128xf32, #tpu.memory_space<vmem>>, vector<1x128xf32>
    %55 = vector.broadcast %54 : vector<1x128xf32> to vector<16x128xf32>
    %56 = arith.addf %53, %55 : vector<16x128xf32>
    %57 = arith.mulf %56, %56 : vector<16x128xf32>
    %58 = arith.mulf %56, %57 : vector<16x128xf32>
    %cst_32 = arith.constant 4.471500e-02 : f32
    %59 = vector.broadcast %cst_32 : f32 to vector<16x128xf32>
    %60 = arith.mulf %59, %58 : vector<16x128xf32>
    %61 = arith.addf %56, %60 : vector<16x128xf32>
    %cst_33 = arith.constant 0.797884583 : f32
    %62 = vector.broadcast %cst_33 : f32 to vector<16x128xf32>
    %63 = arith.mulf %62, %61 : vector<16x128xf32>
    %64 = math.tanh %63 : vector<16x128xf32>
    %cst_34 = arith.constant 1.000000e+00 : f32
    %65 = vector.broadcast %cst_34 : f32 to vector<16x128xf32>
    %66 = arith.addf %65, %64 : vector<16x128xf32>
    %cst_35 = arith.constant 5.000000e-01 : f32
    %67 = vector.broadcast %cst_35 : f32 to vector<16x128xf32>
    %68 = arith.mulf %67, %66 : vector<16x128xf32>
    %69 = arith.mulf %56, %68 : vector<16x128xf32>
    %70 = arith.truncf %69 : vector<16x128xf32> to vector<16x128xbf16>
    %c0_36 = arith.constant 0 : index
    %c0_37 = arith.constant 0 : index
    %71 = vector.load %arg12[%c0_36, %c0_37] : memref<128x128xbf16, #tpu.memory_space<vmem>>, vector<128x128xbf16>
    %cst_38 = arith.constant dense<0.000000e+00> : vector<16x128xf32>
    %72 = tpu.matmul %70, %71, %cst_38 {dimension_numbers = #tpu.dot_dimension_numbers<[1], [0], [0], [1], [0, 0, 1, 1], [], []>} : vector<16x128xbf16>, vector<128x128xbf16>, vector<16x128xf32> -> vector<16x128xf32>
    %c0_39 = arith.constant 0 : index
    %c0_40 = arith.constant 0 : index
    %73 = vector.load %arg13[%c0_39, %c0_40] : memref<1x128xf32, #tpu.memory_space<vmem>>, vector<1x128xf32>
    %74 = vector.broadcast %73 : vector<1x128xf32> to vector<16x128xf32>
    %75 = arith.addf %72, %74 : vector<16x128xf32>
    %76 = arith.mulf %75, %75 : vector<16x128xf32>
    %77 = arith.mulf %75, %76 : vector<16x128xf32>
    %cst_41 = arith.constant 4.471500e-02 : f32
    %78 = vector.broadcast %cst_41 : f32 to vector<16x128xf32>
    %79 = arith.mulf %78, %77 : vector<16x128xf32>
    %80 = arith.addf %75, %79 : vector<16x128xf32>
    %cst_42 = arith.constant 0.797884583 : f32
    %81 = vector.broadcast %cst_42 : f32 to vector<16x128xf32>
    %82 = arith.mulf %81, %80 : vector<16x128xf32>
    %83 = math.tanh %82 : vector<16x128xf32>
    %cst_43 = arith.constant 1.000000e+00 : f32
    %84 = vector.broadcast %cst_43 : f32 to vector<16x128xf32>
    %85 = arith.addf %84, %83 : vector<16x128xf32>
    %cst_44 = arith.constant 5.000000e-01 : f32
    %86 = vector.broadcast %cst_44 : f32 to vector<16x128xf32>
    %87 = arith.mulf %86, %85 : vector<16x128xf32>
    %88 = arith.mulf %75, %87 : vector<16x128xf32>
    %89 = arith.truncf %88 : vector<16x128xf32> to vector<16x128xbf16>
    %c0_45 = arith.constant 0 : index
    %c0_46 = arith.constant 0 : index
    %90 = vector.load %arg14[%c0_45, %c0_46] : memref<128x128xbf16, #tpu.memory_space<vmem>>, vector<128x128xbf16>
    %cst_47 = arith.constant dense<0.000000e+00> : vector<16x128xf32>
    %91 = tpu.matmul %89, %90, %cst_47 {dimension_numbers = #tpu.dot_dimension_numbers<[1], [0], [0], [1], [0, 0, 1, 1], [], []>} : vector<16x128xbf16>, vector<128x128xbf16>, vector<16x128xf32> -> vector<16x128xf32>
    %c0_48 = arith.constant 0 : index
    %c0_49 = arith.constant 0 : index
    %92 = vector.load %arg15[%c0_48, %c0_49] : memref<1x128xf32, #tpu.memory_space<vmem>>, vector<1x128xf32>
    %93 = vector.broadcast %92 : vector<1x128xf32> to vector<16x128xf32>
    %94 = arith.addf %91, %93 : vector<16x128xf32>
    %95 = arith.truncf %94 : vector<16x128xf32> to vector<16x128xbf16>
    %c0_50 = arith.constant 0 : index
    %c0_51 = arith.constant 0 : index
    %96 = vector.load %arg16[%c0_50, %c0_51] : memref<16x128xbf16, #tpu.memory_space<vmem>>, vector<16x128xbf16>
    tpu.vector_store %arg16[%c0_50, %c0_51], %95 {strides = array<i32>} : memref<16x128xbf16, #tpu.memory_space<vmem>>, vector<16x128xbf16>,
    return
  }
  func.func @transform_0(%arg0: i32) -> (i32, i32) {
    %c0_i32 = arith.constant 0 : i32
    %c0_i32_0 = arith.constant 0 : i32
    return %arg0, %c0_i32 : i32, i32
  }
  func.func @transform_1(%arg0: i32) -> (i32, i32) {
    %c0_i32 = arith.constant 0 : i32
    %c0_i32_0 = arith.constant 0 : i32
    return %arg0, %c0_i32 : i32, i32
  }
  func.func @transform_2(%arg0: i32) -> (i32, i32) {
    %c0_i32 = arith.constant 0 : i32
    %c0_i32_0 = arith.constant 0 : i32
    %c0_i32_1 = arith.constant 0 : i32
    return %c0_i32, %c0_i32_0 : i32, i32
  }
  func.func @transform_3(%arg0: i32) -> (i32, i32) {
    %c0_i32 = arith.constant 0 : i32
    %c0_i32_0 = arith.constant 0 : i32
    %c0_i32_1 = arith.constant 0 : i32
    return %c0_i32, %c0_i32_0 : i32, i32
  }
  func.func @transform_4(%arg0: i32) -> (i32, i32) {
    %c0_i32 = arith.constant 0 : i32
    %c0_i32_0 = arith.constant 0 : i32
    %c0_i32_1 = arith.constant 0 : i32
    return %c0_i32, %c0_i32_0 : i32, i32
  }
  func.func @transform_5(%arg0: i32) -> (i32, i32) {
    %c0_i32 = arith.constant 0 : i32
    %c0_i32_0 = arith.constant 0 : i32
    %c0_i32_1 = arith.constant 0 : i32
    return %c0_i32, %c0_i32_0 : i32, i32
  }
  func.func @transform_6(%arg0: i32) -> (i32, i32) {
    %c0_i32 = arith.constant 0 : i32
    %c0_i32_0 = arith.constant 0 : i32
    %c0_i32_1 = arith.constant 0 : i32
    return %c0_i32, %c0_i32_0 : i32, i32
  }
  func.func @transform_7(%arg0: i32) -> (i32, i32) {
    %c0_i32 = arith.constant 0 : i32
    %c0_i32_0 = arith.constant 0 : i32
    %c0_i32_1 = arith.constant 0 : i32
    return %c0_i32, %c0_i32_0 : i32, i32
  }
  func.func @transform_8(%arg0: i32) -> (i32, i32) {
    %c0_i32 = arith.constant 0 : i32
    %c0_i32_0 = arith.constant 0 : i32
    %c0_i32_1 = arith.constant 0 : i32
    return %c0_i32, %c0_i32_0 : i32, i32
  }
  func.func @transform_9(%arg0: i32) -> (i32, i32) {
    %c0_i32 = arith.constant 0 : i32
    %c0_i32_0 = arith.constant 0 : i32
    %c0_i32_1 = arith.constant 0 : i32
    return %c0_i32, %c0_i32_0 : i32, i32
  }
  func.func @transform_10(%arg0: i32) -> (i32, i32) {
    %c0_i32 = arith.constant 0 : i32
    %c0_i32_0 = arith.constant 0 : i32
    %c0_i32_1 = arith.constant 0 : i32
    return %c0_i32, %c0_i32_0 : i32, i32
  }
  func.func @transform_11(%arg0: i32) -> (i32, i32) {
    %c0_i32 = arith.constant 0 : i32
    %c0_i32_0 = arith.constant 0 : i32
    %c0_i32_1 = arith.constant 0 : i32
    return %c0_i32, %c0_i32_0 : i32, i32
  }
  func.func @transform_12(%arg0: i32) -> (i32, i32) {
    %c0_i32 = arith.constant 0 : i32
    %c0_i32_0 = arith.constant 0 : i32
    %c0_i32_1 = arith.constant 0 : i32
    return %c0_i32, %c0_i32_0 : i32, i32
  }
  func.func @transform_13(%arg0: i32) -> (i32, i32) {
    %c0_i32 = arith.constant 0 : i32
    %c0_i32_0 = arith.constant 0 : i32
    %c0_i32_1 = arith.constant 0 : i32
    return %c0_i32, %c0_i32_0 : i32, i32
  }
  func.func @transform_14(%arg0: i32) -> (i32, i32) {
    %c0_i32 = arith.constant 0 : i32
    %c0_i32_0 = arith.constant 0 : i32
    %c0_i32_1 = arith.constant 0 : i32
    return %c0_i32, %c0_i32_0 : i32, i32
  }
  func.func @transform_15(%arg0: i32) -> (i32, i32) {
    %c0_i32 = arith.constant 0 : i32
    %c0_i32_0 = arith.constant 0 : i32
    return %arg0, %c0_i32 : i32, i32
  }
}

</mosaic_0001>

<llo_original>
// kernel: tpu_custom_call.1
$region0: #{tpu_custom_call.1}
  #allocation0 [shape = 'u32[]', space=smem, size = 0x4, offset = 0x4, fixed_abs, tag = 'smem constant byte address 0x4 - core index']
  #allocation1 [shape = 'u32[144,128]{1,0:T(1,128)}', space=vmem, size = 0x12000, scoped, tag = 'internal scratch']
  %s0 = inlined_call_operand.vmem [shape: f32[32,1], index: 0, kind: input, shape index: {}]
  %s1 = inlined_call_operand.vmem [shape: bf16[32,16], index: 1, kind: input, shape index: {}]
  %s2 = inlined_call_operand.vmem [shape: f32[1,256], index: 2, kind: input, shape index: {}]
  %s3 = inlined_call_operand.vmem [shape: f32[1,256], index: 3, kind: input, shape index: {}]
  %s4 = inlined_call_operand.hbm [shape: bf16[256,128], index: 4, kind: input, shape index: {}]
  %s5 = inlined_call_operand.vmem [shape: f32[1,128], index: 5, kind: input, shape index: {}]
  %s6 = inlined_call_operand.vmem [shape: bf16[128,128], index: 6, kind: input, shape index: {}]
  %s7 = inlined_call_operand.vmem [shape: bf16[16,128], index: 7, kind: input, shape index: {}]
  %s8 = inlined_call_operand.vmem [shape: f32[1,128], index: 8, kind: input, shape index: {}]
  %s9 = inlined_call_operand.hbm [shape: bf16[128,128], index: 9, kind: input, shape index: {}]
  %s10 = inlined_call_operand.vmem [shape: f32[1,128], index: 10, kind: input, shape index: {}]
  %s11 = inlined_call_operand.hbm [shape: bf16[128,128], index: 11, kind: input, shape index: {}]
  %s12 = inlined_call_operand.vmem [shape: f32[1,128], index: 12, kind: input, shape index: {}]
  %s13 = inlined_call_operand.hbm [shape: bf16[128,128], index: 13, kind: input, shape index: {}]
  %s14 = inlined_call_operand.vmem [shape: f32[1,128], index: 14, kind: input, shape index: {}]
  %s15 = inlined_call_operand.hbm [shape: bf16[32,128], index: 15, kind: output, shape index: {}]
  %s16 = sld [smem:[#allocation0]]
  $region109: #{tpu_custom_call.1} parent=0
    _
  %s18 = ssub.s32 1, %s16
  %s19 = scalar_select 0, %s18, %s16
  $region1: #{tpu_custom_call.1} parent=0
    #allocation2 [shape = 'u8[65536]{0}', space=vmem, size = 0x10000, scoped, tag = 'input window, operand 4, single buffered']
    #allocation3 [shape = 's32[2]{0}', space=sflag, size = 0x8, scoped, tag = 'scoped memory for tpu_custom_call.1']
    #allocation4 [shape = 's32[2]{0}', space=sflag, size = 0x8, scoped, tag = 'scoped memory for tpu_custom_call.1']
    #allocation5 [shape = 'u8[32768]{0}', space=vmem, size = 0x8000, scoped, tag = 'input window, operand 9, single buffered']
    #allocation6 [shape = 's32[1]{0}', space=sflag, size = 0x4, scoped, tag = 'scoped memory for tpu_custom_call.1']
    #allocation7 [shape = 'u8[32768]{0}', space=vmem, size = 0x8000, scoped, tag = 'input window, operand 11, single buffered']
    #allocation8 [shape = 'u8[32768]{0}', space=vmem, size = 0x8000, scoped, tag = 'input window, operand 13, single buffered']
    #allocation9 [shape = 's32[1]{0}', space=sflag, size = 0x4, scoped, tag = 'scoped memory for tpu_custom_call.1']
    #allocation10 [shape = 'u8[8192]{0}', space=vmem, size = 0x2000, scoped, tag = 'output window, operand 0']
    %20 = vsyncpa [#allocation3], 0
    %21 = vsyncpa [#allocation6], 0
    %22 = vsyncpa [#allocation9], 0
    %23 = vsyncpa [#allocation4], 0
    %s24 = scalar_lea.sflag [#allocation4], 1
    %25 = vsyncpa %s24, 0
    loop: start=0, step=1, limit=4
    $region2: #{tpu_custom_call.1} parent=1 // loop_pre_header
      _
    $region3: #{tpu_custom_call.1} parent=1 // loop_header
      %s27 = sphi 0, %s31
      %p28 = scmp.ge.s32.totalorder %s27, 4
      %s37 = sphi 0, %s39
      %s40 = sphi 0, %s37
      %s41 = sphi 0, %s40
      %s57 = sphi 0, %s41
      %s63 = sphi 0, %s65
      %s66 = sphi 0, %s63
      %s67 = sphi 0, %s66
      %s83 = sphi 0, %s67
      %s87 = sphi 0, %s87
      %s89 = sphi 0, %s87
      %s90 = sphi 0, %s89
      %s104 = sphi 0, %s90
      %s108 = sphi 0, %s108
      %s110 = sphi 0, %s108
      %s111 = sphi 0, %s110
      %s125 = sphi 0, %s111
      %s129 = sphi 0, %s129
      %s131 = sphi 0, %s129
      %s132 = sphi 0, %s131
      %s146 = sphi 0, %s132
      %s150 = sphi 0, %s150
      %s152 = sphi 0, %s150
      %s153 = sphi 0, %s152
      %s167 = sphi 0, %s153
      %s171 = sphi 0, %s171
      %s173 = sphi 0, %s171
      %s174 = sphi 0, %s173
      %s188 = sphi 0, %s174
      %s192 = sphi 0, %s192
      %s194 = sphi 0, %s192
      %s195 = sphi 0, %s194
      %s209 = sphi 0, %s195
      %s213 = sphi 0, %s213
      %s215 = sphi 0, %s213
      %s216 = sphi 0, %s215
      %s230 = sphi 0, %s216
      %s234 = sphi 0, %s234
      %s236 = sphi 0, %s234
      %s237 = sphi 0, %s236
      %s251 = sphi 0, %s237
      %s255 = sphi 0, %s255
      %s257 = sphi 0, %s255
      %s258 = sphi 0, %s257
      %s272 = sphi 0, %s258
      %s276 = sphi 0, %s276
      %s278 = sphi 0, %s276
      %s279 = sphi 0, %s278
      %s293 = sphi 0, %s279
      %s297 = sphi 0, %s297
      %s299 = sphi 0, %s297
      %s300 = sphi 0, %s299
      %s314 = sphi 0, %s300
      %s318 = sphi 0, %s318
      %s320 = sphi 0, %s318
      %s321 = sphi 0, %s320
      %s335 = sphi 0, %s321
      %s339 = sphi 0, %s339
      %s341 = sphi 0, %s339
      %s342 = sphi 0, %s341
      %s356 = sphi 0, %s342
      %s362 = sphi 0, %s364
      %s365 = sphi 0, %s362
      %s366 = sphi 0, %s365
      %s382 = sphi 0, %s366
    $region4: #{tpu_custom_call.1} parent=1 // loop_header_branch
      %30 = sbr.rel (%p28) target = $region8
    $region5: #{tpu_custom_call.1} parent=1 // loop_body
      %s32 = ssub.s32 %s27, 1
      %s33 = ssub.s32 %s27, 2
      %s34 = sadd.s32 %s27, 1
      %s35 = ssub.s32 %s27, %s34
      %p36 = scmp.eq.s32.totalorder %s35, 0
      %s38 = sadd.s32 %s37, 1
      %s39 = scalar_select %p36, %s37, %s38
      %p42 = pneg %p36
      %p43 = scmp.eq.s32.totalorder %s27, 1
      %p44 = por %p42, %p43
      %p45 = scmp.ne.s32.totalorder %s37, %s40
      %p46 = scmp.eq.s32.totalorder %s27, 0
      %p47 = por %p45, %p46
      %p48 = scmp.ne.s32.totalorder %s37, %s40
      %p49 = scmp.eq.s32.totalorder %s32, 1
      %p50 = por %p48, %p49
      %p51 = scmp.ne.s32.totalorder %s40, %s41
      %p52 = scmp.eq.s32.totalorder %s32, 0
      %p53 = por %p51, %p52
      %p54 = scmp.ne.s32.totalorder %s40, %s41
      %p55 = scmp.eq.s32.totalorder %s33, 1
      %p56 = por %p54, %p55
      %p58 = scmp.ne.s32.totalorder %s41, %s57
      %p59 = scmp.eq.s32.totalorder %s33, 0
      %p60 = por %p58, %p59
      %s61 = ssub.s32 %s27, %s34
      %p62 = scmp.eq.s32.totalorder %s61, 0
      %s64 = sadd.s32 %s63, 1
      %s65 = scalar_select %p62, %s63, %s64
      %p68 = pneg %p62
      %p69 = scmp.eq.s32.totalorder %s27, 1
      %p70 = por %p68, %p69
      %p71 = scmp.ne.s32.totalorder %s63, %s66
      %p72 = scmp.eq.s32.totalorder %s27, 0
      %p73 = por %p71, %p72
      %p74 = scmp.ne.s32.totalorder %s63, %s66
      %p75 = scmp.eq.s32.totalorder %s32, 1
      %p76 = por %p74, %p75
      %p77 = scmp.ne.s32.totalorder %s66, %s67
      %p78 = scmp.eq.s32.totalorder %s32, 0
      %p79 = por %p77, %p78
      %p80 = scmp.ne.s32.totalorder %s66, %s67
      %p81 = scmp.eq.s32.totalorder %s33, 1
      %p82 = por %p80, %p81
      %p84 = scmp.ne.s32.totalorder %s67, %s83
      %p85 = scmp.eq.s32.totalorder %s33, 0
      %p86 = por %p84, %p85
      %s88 = sadd.s32 %s87, 1
      %p91 = scmp.eq.s32.totalorder %s27, 1
      %p92 = scmp.ne.s32.totalorder %s87, %s89
      %p93 = scmp.eq.s32.totalorder %s27, 0
      %p94 = por %p92, %p93
      %p95 = scmp.ne.s32.totalorder %s87, %s89
      %p96 = scmp.eq.s32.totalorder %s32, 1
      %p97 = por %p95, %p96
      %p98 = scmp.ne.s32.totalorder %s89, %s90
      %p99 = scmp.eq.s32.totalorder %s32, 0
      %p100 = por %p98, %p99
      %p101 = scmp.ne.s32.totalorder %s89, %s90
      %p102 = scmp.eq.s32.totalorder %s33, 1
      %p103 = por %p101, %p102
      %p105 = scmp.ne.s32.totalorder %s90, %s104
      %p106 = scmp.eq.s32.totalorder %s33, 0
      %p107 = por %p105, %p106
      %s109 = sadd.s32 %s108, 1
      %p112 = scmp.eq.s32.totalorder %s27, 1
      %p113 = scmp.ne.s32.totalorder %s108, %s110
      %p114 = scmp.eq.s32.totalorder %s27, 0
      %p115 = por %p113, %p114
      %p116 = scmp.ne.s32.totalorder %s108, %s110
      %p117 = scmp.eq.s32.totalorder %s32, 1
      %p118 = por %p116, %p117
      %p119 = scmp.ne.s32.totalorder %s110, %s111
      %p120 = scmp.eq.s32.totalorder %s32, 0
      %p121 = por %p119, %p120
      %p122 = scmp.ne.s32.totalorder %s110, %s111
      %p123 = scmp.eq.s32.totalorder %s33, 1
      %p124 = por %p122, %p123
      %p126 = scmp.ne.s32.totalorder %s111, %s125
      %p127 = scmp.eq.s32.totalorder %s33, 0
      %p128 = por %p126, %p127
      %s130 = sadd.s32 %s129, 1
      %p133 = scmp.eq.s32.totalorder %s27, 1
      %p134 = scmp.ne.s32.totalorder %s129, %s131
      %p135 = scmp.eq.s32.totalorder %s27, 0
      %p136 = por %p134, %p135
      %p137 = scmp.ne.s32.totalorder %s129, %s131
      %p138 = scmp.eq.s32.totalorder %s32, 1
      %p139 = por %p137, %p138
      %p140 = scmp.ne.s32.totalorder %s131, %s132
      %p141 = scmp.eq.s32.totalorder %s32, 0
      %p142 = por %p140, %p141
      %p143 = scmp.ne.s32.totalorder %s131, %s132
      %p144 = scmp.eq.s32.totalorder %s33, 1
      %p145 = por %p143, %p144
      %p147 = scmp.ne.s32.totalorder %s132, %s146
      %p148 = scmp.eq.s32.totalorder %s33, 0
      %p149 = por %p147, %p148
      %s151 = sadd.s32 %s150, 1
      %p154 = scmp.eq.s32.totalorder %s27, 1
      %p155 = scmp.ne.s32.totalorder %s150, %s152
      %p156 = scmp.eq.s32.totalorder %s27, 0
      %p157 = por %p155, %p156
      %p158 = scmp.ne.s32.totalorder %s150, %s152
      %p159 = scmp.eq.s32.totalorder %s32, 1
      %p160 = por %p158, %p159
      %p161 = scmp.ne.s32.totalorder %s152, %s153
      %p162 = scmp.eq.s32.totalorder %s32, 0
      %p163 = por %p161, %p162
      %p164 = scmp.ne.s32.totalorder %s152, %s153
      %p165 = scmp.eq.s32.totalorder %s33, 1
      %p166 = por %p164, %p165
      %p168 = scmp.ne.s32.totalorder %s153, %s167
      %p169 = scmp.eq.s32.totalorder %s33, 0
      %p170 = por %p168, %p169
      %s172 = sadd.s32 %s171, 1
      %p175 = scmp.eq.s32.totalorder %s27, 1
      %p176 = scmp.ne.s32.totalorder %s171, %s173
      %p177 = scmp.eq.s32.totalorder %s27, 0
      %p178 = por %p176, %p177
      %p179 = scmp.ne.s32.totalorder %s171, %s173
      %p180 = scmp.eq.s32.totalorder %s32, 1
      %p181 = por %p179, %p180
      %p182 = scmp.ne.s32.totalorder %s173, %s174
      %p183 = scmp.eq.s32.totalorder %s32, 0
      %p184 = por %p182, %p183
      %p185 = scmp.ne.s32.totalorder %s173, %s174
      %p186 = scmp.eq.s32.totalorder %s33, 1
      %p187 = por %p185, %p186
      %p189 = scmp.ne.s32.totalorder %s174, %s188
      %p190 = scmp.eq.s32.totalorder %s33, 0
      %p191 = por %p189, %p190
      %s193 = sadd.s32 %s192, 1
      %p196 = scmp.eq.s32.totalorder %s27, 1
      %p197 = scmp.ne.s32.totalorder %s192, %s194
      %p198 = scmp.eq.s32.totalorder %s27, 0
      %p199 = por %p197, %p198
      %p200 = scmp.ne.s32.totalorder %s192, %s194
      %p201 = scmp.eq.s32.totalorder %s32, 1
      %p202 = por %p200, %p201
      %p203 = scmp.ne.s32.totalorder %s194, %s195
      %p204 = scmp.eq.s32.totalorder %s32, 0
      %p205 = por %p203, %p204
      %p206 = scmp.ne.s32.totalorder %s194, %s195
      %p207 = scmp.eq.s32.totalorder %s33, 1
      %p208 = por %p206, %p207
      %p210 = scmp.ne.s32.totalorder %s195, %s209
      %p211 = scmp.eq.s32.totalorder %s33, 0
      %p212 = por %p210, %p211
      %s214 = sadd.s32 %s213, 1
      %p217 = scmp.eq.s32.totalorder %s27, 1
      %p218 = scmp.ne.s32.totalorder %s213, %s215
      %p219 = scmp.eq.s32.totalorder %s27, 0
      %p220 = por %p218, %p219
      %p221 = scmp.ne.s32.totalorder %s213, %s215
      %p222 = scmp.eq.s32.totalorder %s32, 1
      %p223 = por %p221, %p222
      %p224 = scmp.ne.s32.totalorder %s215, %s216
      %p225 = scmp.eq.s32.totalorder %s32, 0
      %p226 = por %p224, %p225
      %p227 = scmp.ne.s32.totalorder %s215, %s216
      %p228 = scmp.eq.s32.totalorder %s33, 1
      %p229 = por %p227, %p228
      %p231 = scmp.ne.s32.totalorder %s216, %s230
      %p232 = scmp.eq.s32.totalorder %s33, 0
      %p233 = por %p231, %p232
      %s235 = sadd.s32 %s234, 1
      %p238 = scmp.eq.s32.totalorder %s27, 1
      %p239 = scmp.ne.s32.totalorder %s234, %s236
      %p240 = scmp.eq.s32.totalorder %s27, 0
      %p241 = por %p239, %p240
      %p242 = scmp.ne.s32.totalorder %s234, %s236
      %p243 = scmp.eq.s32.totalorder %s32, 1
      %p244 = por %p242, %p243
      %p245 = scmp.ne.s32.totalorder %s236, %s237
      %p246 = scmp.eq.s32.totalorder %s32, 0
      %p247 = por %p245, %p246
      %p248 = scmp.ne.s32.totalorder %s236, %s237
      %p249 = scmp.eq.s32.totalorder %s33, 1
      %p250 = por %p248, %p249
      %p252 = scmp.ne.s32.totalorder %s237, %s251
      %p253 = scmp.eq.s32.totalorder %s33, 0
      %p254 = por %p252, %p253
      %s256 = sadd.s32 %s255, 1
      %p259 = scmp.eq.s32.totalorder %s27, 1
      %p260 = scmp.ne.s32.totalorder %s255, %s257
      %p261 = scmp.eq.s32.totalorder %s27, 0
      %p262 = por %p260, %p261
      %p263 = scmp.ne.s32.totalorder %s255, %s257
      %p264 = scmp.eq.s32.totalorder %s32, 1
      %p265 = por %p263, %p264
      %p266 = scmp.ne.s32.totalorder %s257, %s258
      %p267 = scmp.eq.s32.totalorder %s32, 0
      %p268 = por %p266, %p267
      %p269 = scmp.ne.s32.totalorder %s257, %s258
      %p270 = scmp.eq.s32.totalorder %s33, 1
      %p271 = por %p269, %p270
      %p273 = scmp.ne.s32.totalorder %s258, %s272
      %p274 = scmp.eq.s32.totalorder %s33, 0
      %p275 = por %p273, %p274
      %s277 = sadd.s32 %s276, 1
      %p280 = scmp.eq.s32.totalorder %s27, 1
      %p281 = scmp.ne.s32.totalorder %s276, %s278
      %p282 = scmp.eq.s32.totalorder %s27, 0
      %p283 = por %p281, %p282
      %p284 = scmp.ne.s32.totalorder %s276, %s278
      %p285 = scmp.eq.s32.totalorder %s32, 1
      %p286 = por %p284, %p285
      %p287 = scmp.ne.s32.totalorder %s278, %s279
      %p288 = scmp.eq.s32.totalorder %s32, 0
      %p289 = por %p287, %p288
      %p290 = scmp.ne.s32.totalorder %s278, %s279
      %p291 = scmp.eq.s32.totalorder %s33, 1
      %p292 = por %p290, %p291
      %p294 = scmp.ne.s32.totalorder %s279, %s293
      %p295 = scmp.eq.s32.totalorder %s33, 0
      %p296 = por %p294, %p295
      %s298 = sadd.s32 %s297, 1
      %p301 = scmp.eq.s32.totalorder %s27, 1
      %p302 = scmp.ne.s32.totalorder %s297, %s299
      %p303 = scmp.eq.s32.totalorder %s27, 0
      %p304 = por %p302, %p303
      %p305 = scmp.ne.s32.totalorder %s297, %s299
      %p306 = scmp.eq.s32.totalorder %s32, 1
      %p307 = por %p305, %p306
      %p308 = scmp.ne.s32.totalorder %s299, %s300
      %p309 = scmp.eq.s32.totalorder %s32, 0
      %p310 = por %p308, %p309
      %p311 = scmp.ne.s32.totalorder %s299, %s300
      %p312 = scmp.eq.s32.totalorder %s33, 1
      %p313 = por %p311, %p312
      %p315 = scmp.ne.s32.totalorder %s300, %s314
      %p316 = scmp.eq.s32.totalorder %s33, 0
      %p317 = por %p315, %p316
      %s319 = sadd.s32 %s318, 1
      %p322 = scmp.eq.s32.totalorder %s27, 1
      %p323 = scmp.ne.s32.totalorder %s318, %s320
      %p324 = scmp.eq.s32.totalorder %s27, 0
      %p325 = por %p323, %p324
      %p326 = scmp.ne.s32.totalorder %s318, %s320
      %p327 = scmp.eq.s32.totalorder %s32, 1
      %p328 = por %p326, %p327
      %p329 = scmp.ne.s32.totalorder %s320, %s321
      %p330 = scmp.eq.s32.totalorder %s32, 0
      %p331 = por %p329, %p330
      %p332 = scmp.ne.s32.totalorder %s320, %s321
      %p333 = scmp.eq.s32.totalorder %s33, 1
      %p334 = por %p332, %p333
      %p336 = scmp.ne.s32.totalorder %s321, %s335
      %p337 = scmp.eq.s32.totalorder %s33, 0
      %p338 = por %p336, %p337
      %s340 = sadd.s32 %s339, 1
      %p343 = scmp.eq.s32.totalorder %s27, 1
      %p344 = scmp.ne.s32.totalorder %s339, %s341
      %p345 = scmp.eq.s32.totalorder %s27, 0
      %p346 = por %p344, %p345
      %p347 = scmp.ne.s32.totalorder %s339, %s341
      %p348 = scmp.eq.s32.totalorder %s32, 1
      %p349 = por %p347, %p348
      %p350 = scmp.ne.s32.totalorder %s341, %s342
      %p351 = scmp.eq.s32.totalorder %s32, 0
      %p352 = por %p350, %p351
      %p353 = scmp.ne.s32.totalorder %s341, %s342
      %p354 = scmp.eq.s32.totalorder %s33, 1
      %p355 = por %p353, %p354
      %p357 = scmp.ne.s32.totalorder %s342, %s356
      %p358 = scmp.eq.s32.totalorder %s33, 0
      %p359 = por %p357, %p358
      %s360 = ssub.s32 %s27, %s34
      %p361 = scmp.eq.s32.totalorder %s360, 0
      %s363 = sadd.s32 %s362, 1
      %s364 = scalar_select %p361, %s362, %s363
      %p367 = pneg %p361
      %p368 = scmp.eq.s32.totalorder %s27, 1
      %p369 = por %p367, %p368
      %p370 = scmp.ne.s32.totalorder %s362, %s365
      %p371 = scmp.eq.s32.totalorder %s27, 0
      %p372 = por %p370, %p371
      %p373 = scmp.ne.s32.totalorder %s362, %s365
      %p374 = scmp.eq.s32.totalorder %s32, 1
      %p375 = por %p373, %p374
      %p376 = scmp.ne.s32.totalorder %s365, %s366
      %p377 = scmp.eq.s32.totalorder %s32, 0
      %p378 = por %p376, %p377
      %p379 = scmp.ne.s32.totalorder %s365, %s366
      %p380 = scmp.eq.s32.totalorder %s33, 1
      %p381 = por %p379, %p380
      %p383 = scmp.ne.s32.totalorder %s366, %s382
      %p384 = scmp.eq.s32.totalorder %s33, 0
      %p385 = por %p383, %p384
      %p386 = scmp.le.s32.totalorder 1, %s27
      %p387 = scmp.lt.s32.totalorder %s27, 3
      %p388 = pnand %p386, %p387
      %p389 = pneg %p388
      // Predicated region
      $region9: #{tpu_custom_call.1} parent=5 // pred_check
        _
      $region10: #{tpu_custom_call.1} parent=5 // pred_check_branch
        %391 = sbr.rel (%p388) target = $region12
      $region11: #{tpu_custom_call.1} parent=5 // pred_region
        %s392 = ssub.s32 %s27, 1
        // Predicated region
        $region13: #{tpu_custom_call.1} parent=11 // pred_check
          %p393 = pneg %p100
        $region14: #{tpu_custom_call.1} parent=11 // pred_check_branch
          %395 = sbr.rel (%p393) target = $region16
        $region15: #{tpu_custom_call.1} parent=11 // pred_region
          _
        $region16: #{tpu_custom_call.1} parent=11 // pred_fallthru
          _
        // Predicated region
        $region17: #{tpu_custom_call.1} parent=11 // pred_check
          %p396 = pneg %p121
        $region18: #{tpu_custom_call.1} parent=11 // pred_check_branch
          %398 = sbr.rel (%p396) target = $region20
        $region19: #{tpu_custom_call.1} parent=11 // pred_region
          _
        $region20: #{tpu_custom_call.1} parent=11 // pred_fallthru
          _
        // Predicated region
        $region21: #{tpu_custom_call.1} parent=11 // pred_check
          %p399 = pneg %p142
        $region22: #{tpu_custom_call.1} parent=11 // pred_check_branch
          %401 = sbr.rel (%p399) target = $region24
        $region23: #{tpu_custom_call.1} parent=11 // pred_region
          %s403 = ssub.s32 2048, 2048
          %404 = vsyncadd [#allocation3], %s403
          %s405 = sshll.u32 [#allocation2], 4
          %s406 = int_to_ptr.vmem [resolvable:$true] %s405
          %411 = dma.hbm_to_vmem [thread:$0]  %s4, 2048, %s406, [#allocation3], 64, 64, 4
        $region24: #{tpu_custom_call.1} parent=11 // pred_fallthru
          _
        // Predicated region
        $region25: #{tpu_custom_call.1} parent=11 // pred_check
          %p412 = pneg %p163
        $region26: #{tpu_custom_call.1} parent=11 // pred_check_branch
          %414 = sbr.rel (%p412) target = $region28
        $region27: #{tpu_custom_call.1} parent=11 // pred_region
          _
        $region28: #{tpu_custom_call.1} parent=11 // pred_fallthru
          _
        // Predicated region
        $region29: #{tpu_custom_call.1} parent=11 // pred_check
          %p415 = pneg %p184
        $region30: #{tpu_custom_call.1} parent=11 // pred_check_branch
          %417 = sbr.rel (%p415) target = $region32
        $region31: #{tpu_custom_call.1} parent=11 // pred_region
          _
        $region32: #{tpu_custom_call.1} parent=11 // pred_fallthru
          _
        // Predicated region
        $region33: #{tpu_custom_call.1} parent=11 // pred_check
          %p418 = pneg %p205
        $region34: #{tpu_custom_call.1} parent=11 // pred_check_branch
          %420 = sbr.rel (%p418) target = $region36
        $region35: #{tpu_custom_call.1} parent=11 // pred_region
          _
        $region36: #{tpu_custom_call.1} parent=11 // pred_fallthru
          _
        // Predicated region
        $region37: #{tpu_custom_call.1} parent=11 // pred_check
          %p421 = pneg %p226
        $region38: #{tpu_custom_call.1} parent=11 // pred_check_branch
          %423 = sbr.rel (%p421) target = $region40
        $region39: #{tpu_custom_call.1} parent=11 // pred_region
          _
        $region40: #{tpu_custom_call.1} parent=11 // pred_fallthru
          _
        // Predicated region
        $region41: #{tpu_custom_call.1} parent=11 // pred_check
          %p424 = pneg %p247
        $region42: #{tpu_custom_call.1} parent=11 // pred_check_branch
          %426 = sbr.rel (%p424) target = $region44
        $region43: #{tpu_custom_call.1} parent=11 // pred_region
          %s428 = ssub.s32 1024, 1024
          %429 = vsyncadd [#allocation6], %s428
          %s430 = sshll.u32 [#allocation5], 4
          %s431 = int_to_ptr.vmem [resolvable:$true] %s430
          %436 = dma.hbm_to_vmem [thread:$0]  %s9, 1024, %s431, [#allocation6], 64, 64, 4
        $region44: #{tpu_custom_call.1} parent=11 // pred_fallthru
          _
        // Predicated region
        $region45: #{tpu_custom_call.1} parent=11 // pred_check
          %p437 = pneg %p268
        $region46: #{tpu_custom_call.1} parent=11 // pred_check_branch
          %439 = sbr.rel (%p437) target = $region48
        $region47: #{tpu_custom_call.1} parent=11 // pred_region
          _
        $region48: #{tpu_custom_call.1} parent=11 // pred_fallthru
          _
        // Predicated region
        $region49: #{tpu_custom_call.1} parent=11 // pred_check
          %p440 = pneg %p289
        $region50: #{tpu_custom_call.1} parent=11 // pred_check_branch
          %442 = sbr.rel (%p440) target = $region52
        $region51: #{tpu_custom_call.1} parent=11 // pred_region
          %s444 = ssub.s32 1024, 1024
          %445 = vsyncadd [#allocation6], %s444
          %s446 = sshll.u32 [#allocation7], 4
          %s447 = int_to_ptr.vmem [resolvable:$true] %s446
          %452 = dma.hbm_to_vmem [thread:$0]  %s11, 1024, %s447, [#allocation6], 64, 64, 4
        $region52: #{tpu_custom_call.1} parent=11 // pred_fallthru
          _
        // Predicated region
        $region53: #{tpu_custom_call.1} parent=11 // pred_check
          %p453 = pneg %p310
        $region54: #{tpu_custom_call.1} parent=11 // pred_check_branch
          %455 = sbr.rel (%p453) target = $region56
        $region55: #{tpu_custom_call.1} parent=11 // pred_region
          _
        $region56: #{tpu_custom_call.1} parent=11 // pred_fallthru
          _
        // Predicated region
        $region57: #{tpu_custom_call.1} parent=11 // pred_check
          %p456 = pneg %p331
        $region58: #{tpu_custom_call.1} parent=11 // pred_check_branch
          %458 = sbr.rel (%p456) target = $region60
        $region59: #{tpu_custom_call.1} parent=11 // pred_region
          %s460 = ssub.s32 1024, 1024
          %461 = vsyncadd [#allocation9], %s460
          %s462 = sshll.u32 [#allocation8], 4
          %s463 = int_to_ptr.vmem [resolvable:$true] %s462
          %468 = dma.hbm_to_vmem [thread:$0]  %s13, 1024, %s463, [#allocation9], 64, 64, 4
        $region60: #{tpu_custom_call.1} parent=11 // pred_fallthru
          _
        // Predicated region
        $region61: #{tpu_custom_call.1} parent=11 // pred_check
          %p469 = pneg %p352
        $region62: #{tpu_custom_call.1} parent=11 // pred_check_branch
          %471 = sbr.rel (%p469) target = $region64
        $region63: #{tpu_custom_call.1} parent=11 // pred_region
          _
        $region64: #{tpu_custom_call.1} parent=11 // pred_fallthru
          _
      $region12: #{tpu_custom_call.1} parent=5 // pred_fallthru
        _
      %p472 = scmp.lt.s32.totalorder %s27, 2
      // Predicated region
      $region65: #{tpu_custom_call.1} parent=5 // pred_check
        %p473 = pneg %p472
      $region66: #{tpu_custom_call.1} parent=5 // pred_check_branch
        %475 = sbr.rel (%p473) target = $region68
      $region67: #{tpu_custom_call.1} parent=5 // pred_region
        // Predicated region
        $region69: #{tpu_custom_call.1} parent=67 // pred_check
          %p476 = pneg %p47
        $region70: #{tpu_custom_call.1} parent=67 // pred_check_branch
          %478 = sbr.rel (%p476) target = $region72
        $region71: #{tpu_custom_call.1} parent=67 // pred_region
          %s479 = smul.u32 2, %s27
          %p480 = scmp.lt.s32.totalorder %s479, 3
          %s481 = scalar_select %p480, %s479, 3
          %s482 = smul.addr %s481, 8
          %s483 = scalar_lea.vmem %s0, %s482
          %s484 = smul.u32 2, %s27
        $region72: #{tpu_custom_call.1} parent=67 // pred_fallthru
          _
        // Predicated region
        $region73: #{tpu_custom_call.1} parent=67 // pred_check
          %p485 = pneg %p73
        $region74: #{tpu_custom_call.1} parent=67 // pred_check_branch
          %487 = sbr.rel (%p485) target = $region76
        $region75: #{tpu_custom_call.1} parent=67 // pred_region
          %s488 = smul.u32 2, %s27
          %p489 = scmp.lt.s32.totalorder %s488, 3
          %s490 = scalar_select %p489, %s488, 3
          %s491 = smul.addr %s490, 4
          %s492 = scalar_lea.vmem %s1, %s491
          %s493 = smul.u32 2, %s27
        $region76: #{tpu_custom_call.1} parent=67 // pred_fallthru
          _
      $region68: #{tpu_custom_call.1} parent=5 // pred_fallthru
        _
      %p494 = scmp.le.s32.totalorder 1, %s27
      %p495 = scmp.lt.s32.totalorder %s27, 3
      %p496 = pnand %p494, %p495
      %p497 = pneg %p496
      // Predicated region
      $region77: #{tpu_custom_call.1} parent=5 // pred_check
        _
      $region78: #{tpu_custom_call.1} parent=5 // pred_check_branch
        %499 = sbr.rel (%p496) target = $region80
      $region79: #{tpu_custom_call.1} parent=5 // pred_region
        %s500 = ssub.s32 %s27, 1
        // Predicated region
        $region81: #{tpu_custom_call.1} parent=79 // pred_check
          %p501 = pneg %p142
        $region82: #{tpu_custom_call.1} parent=79 // pred_check_branch
          %503 = sbr.rel (%p501) target = $region84
        $region83: #{tpu_custom_call.1} parent=79 // pred_region
          %504 = dma.done [#allocation3], 2048
        $region84: #{tpu_custom_call.1} parent=79 // pred_fallthru
          _
        // Predicated region
        $region85: #{tpu_custom_call.1} parent=79 // pred_check
          %p505 = pneg %p247
        $region86: #{tpu_custom_call.1} parent=79 // pred_check_branch
          %507 = sbr.rel (%p505) target = $region88
        $region87: #{tpu_custom_call.1} parent=79 // pred_region
          %508 = dma.done [#allocation6], 1024
        $region88: #{tpu_custom_call.1} parent=79 // pred_fallthru
          _
        // Predicated region
        $region89: #{tpu_custom_call.1} parent=79 // pred_check
          %p509 = pneg %p289
        $region90: #{tpu_custom_call.1} parent=79 // pred_check_branch
          %511 = sbr.rel (%p509) target = $region92
        $region91: #{tpu_custom_call.1} parent=79 // pred_region
          %512 = dma.done [#allocation6], 1024
        $region92: #{tpu_custom_call.1} parent=79 // pred_fallthru
          _
        // Predicated region
        $region93: #{tpu_custom_call.1} parent=79 // pred_check
          %p513 = pneg %p331
        $region94: #{tpu_custom_call.1} parent=79 // pred_check_branch
          %515 = sbr.rel (%p513) target = $region96
        $region95: #{tpu_custom_call.1} parent=79 // pred_region
          %516 = dma.done [#allocation9], 1024
        $region96: #{tpu_custom_call.1} parent=79 // pred_fallthru
          _
        %s517 = smul.u32 2, %s32
        %p518 = scmp.lt.s32.totalorder %s517, 3
        %s519 = scalar_select %p518, %s517, 3
        %s520 = smul.addr %s519, 8
        %s521 = scalar_lea.vmem %s0, %s520
        %p522 = pneg %p53
        %p523 = pneg %p50
        %s524 = smul.u32 2, %s32
        %p525 = scmp.lt.s32.totalorder %s524, 3
        %s526 = scalar_select %p525, %s524, 3
        %s527 = smul.addr %s526, 4
        %s528 = scalar_lea.vmem %s1, %s527
        %p529 = pneg %p79
        %p530 = pneg %p76
        %p531 = pneg %p100
        %p532 = pneg %p97
        %p533 = pneg %p121
        %p534 = pneg %p118
        %p535 = pneg %p142
        %p536 = pneg %p139
        %p537 = pneg %p163
        %p538 = pneg %p160
        %p539 = pneg %p184
        %p540 = pneg %p181
        %p541 = pneg %p205
        %p542 = pneg %p202
        %p543 = pneg %p226
        %p544 = pneg %p223
        %p545 = pneg %p247
        %p546 = pneg %p244
        %p547 = pneg %p268
        %p548 = pneg %p265
        %p549 = pneg %p289
        %p550 = pneg %p286
        %p551 = pneg %p310
        %p552 = pneg %p307
        %p553 = pneg %p331
        %p554 = pneg %p328
        %p555 = pneg %p352
        %p556 = pneg %p349
        %p557 = pneg %p378
        %p558 = pneg %p375
        %s559 = sand.u32 %s365, 1
        %s560 = scalar_lea.sflag [#allocation4], %s559
        %s561 = sand.u32 %s365, 1
        %s562 = smul.addr %s561, 8
        %s563 = scalar_lea.vmem [#allocation10], %s562
        %s564 = smul.u32 2, %s32
        %p565 = scmp.lt.s32.totalorder %s564, 3
        %s566 = scalar_select %p565, %s564, 3
        %s567 = smul.addr %s566, 8
        %s568 = scalar_lea.vmem %s0, %s567
        %s569 = smul.u32 2, %s32
        %s570 = smul.u32 2, %s32
        %p571 = scmp.lt.s32.totalorder %s570, 3
        %s572 = scalar_select %p571, %s570, 3
        %s573 = smul.addr %s572, 4
        %s574 = scalar_lea.vmem %s1, %s573
        %s575 = smul.u32 2, %s32
        %s576 = smul.u32 2, %s32
        %v578 = vld [vmem:[%s568] sm:$0xff]
        %v579 = vld [vmem:[%s568 + $0x8] sm:$0xff]
        %v580 = vld [vmem:[%s2] sm:$0x3]
        %v582 = vlaneseq
        %v583 = vshrl.u32 %v582, 7
        %v584 = vsub.s32 0, %v583
        %v585 = vrot.slane %v580, %v584
        %v586 = vlaneseq
        %v587 = vshrl.u32 %v586, 7
        %v588 = vsub.s32 1, %v587
        %v589 = vrot.slane %v580, %v588
        %593 = vset.pattern.permute.xlu0 0
        %594 = vperm.xlu0 %593, %v578
        %v595 = vpop.permute.xlu0 %594
        %598 = vset.pattern.permute.xlu0 0
        %599 = vperm.xlu0 %598, %v579
        %v600 = vpop.permute.xlu0 %599
        %v602 = vmul.f32 %v585, %v595
        %v603 = vmul.f32 %v589, %v595
        %v604 = vmul.f32 %v585, %v600
        %v605 = vmul.f32 %v589, %v600
        %v606 = vld [vmem:[%s3] sm:$0x3]
        %v608 = vlaneseq
        %v609 = vshrl.u32 %v608, 7
        %v610 = vsub.s32 0, %v609
        %v611 = vrot.slane %v606, %v610
        %v612 = vlaneseq
        %v613 = vshrl.u32 %v612, 7
        %v614 = vsub.s32 1, %v613
        %v615 = vrot.slane %v606, %v614
        %v618 = vadd.f32 %v602, %v611
        %v619 = vadd.f32 %v603, %v615
        %v620 = vadd.f32 %v604, %v611
        %v621 = vadd.f32 %v605, %v615
        %v622 = vand.u32 2147483647, %v618
        %vm623 = vcmp.le.f32.partialorder %v622, 0.7853982
        %vm624 = vcmp.lt.s32.totalorder %v618, 0
        %v625 = vand.u32 %v618, 2139095040
        %v626 = vshrl.u32 %v625, 23
        %v627 = vsub.s32 %v626, 127
        %v628 = vand.u32 2147483647, %v618
        %v629 = vand.u32 %v628, 8388607
        %v630 = vor.u32 %v629, 8388608
        %v631 = vsub.s32 0, %v630
        %v632 = vadd.s32 %v627, 1
        %vm633 = vcmp.gt.s32.totalorder %v632, 0
        %v634 = vsel %vm633, %v632, 0
        %v635 = vshrl.u32 %v634, 5
        %v636 = vand.u32 %v634, 31
        %v637 = vsub.s32 32, %v636
        %v638 = vshrl.u32 683565275, %v637
        %v639 = vshll.u32 683565275, %v636
        %v640 = vshrl.u32 2475754826, %v637
        %v641 = vor.u32 %v639, %v640
        %v642 = vshll.u32 2475754826, %v636
        %v643 = vshrl.u32 2131351028, %v637
        %v644 = vor.u32 %v642, %v643
        %v645 = vshll.u32 2131351028, %v636
        %v646 = vshrl.u32 2102212464, %v637
        %v647 = vor.u32 %v645, %v646
        %v648 = vshll.u32 2102212464, %v636
        %v649 = vshrl.u32 920167782, %v637
        %v650 = vor.u32 %v648, %v649
        %v651 = vshll.u32 920167782, %v636
        %v652 = vshrl.u32 1326507024, %v637
        %v653 = vor.u32 %v651, %v652
        %vm654 = vcmp.lt.s32.totalorder %v635, 1
        %vm655 = vcmp.lt.s32.totalorder %v635, 2
        %vm656 = vcmp.lt.s32.totalorder %v635, 3
        %vm657 = vcmp.lt.s32.totalorder %v635, 4
        %v658 = vsel %vm654, %v638, %v641
        %v659 = vsel %vm657, %v647, 2102212464
        %v660 = vsel %vm656, %v644, %v659
        %v661 = vsel %vm655, %v658, %v660
        %v662 = vsel %vm654, %v641, %v644
        %v663 = vsel %vm657, %v650, 920167782
        %v664 = vsel %vm656, %v647, %v663
        %v665 = vsel %vm655, %v662, %v664
        %v666 = vsel %vm654, %v644, %v647
        %v667 = vsel %vm657, %v653, 1326507024
        %v668 = vsel %vm656, %v650, %v667
        %v669 = vsel %vm655, %v666, %v668
        %v670 = vshll.u32 %v630, 8
        %v671 = vmul.u32.u64.compose %v670, %v669
        %v672 = vextract.low.u32 %v671
        %v673 = vextract.high.u32 %v671
        %v674 = vmul.u32.u64.compose %v670, %v665
        %v675 = vextract.low.u32 %v674
        %v676 = vextract.high.u32 %v674
        %v677 = vmul.u32 %v670, %v661
        %v678 = vadd.s32 %v673, %v675
        %vm679 = vc.u32 %v673, %v675
        %v680 = vadd.s32 %v676, 1
        %v681 = vsel %vm679, %v680, %v676
        %v682 = vadd.s32 %v677, %v681
        %v683 = vadd.s32 %v682, 536870912
        %v684 = vshrl.u32 %v683, 30
        %v685 = vshll.u32 %v684, 30
        %v686 = vsub.s32 %v682, %v685
        %vm687 = vcmp.lt.s32.totalorder %v686, 0
        %v688 = vsub.s32 0, %v686
        %v689 = vsel %vm687, %v688, %v686
        %v690 = vclz %v689
        %v691 = vsub.s32 %v690, 2
        %vm692 = vcmp.gt.s32.totalorder 0, %v691
        %v693 = vsel %vm692, 0, %v691
        %v694 = vsub.s32 32, %v693
        %v695 = vshll.u32 %v686, %v693
        %v696 = vshrl.u32 %v678, %v694
        %v697 = vor.u32 %v695, %v696
        %v698 = vsub.s32 4294967266, %v693
        %v699 = vadd.s32 %v698, 127
        %v700 = vshll.u32 %v699, 23
        %v701 = vor.u32 4788187, %v700
        %v702 = vand.u32 2147483647, %v701
        %v704 = vcvt.s32.f32 %v697
        %v705 = vmul.f32 %v704, %v702
        %v706 = vxor.u32 %v705, 2147483648
        %v707 = vsel %vm624, %v706, %v705
        %v708 = vsub.s32 4, %v684
        %v709 = vsel %vm624, %v708, %v684
        %v710 = vsel %vm623, %v618, %v707
        %v711 = vsel %vm623, 0, %v709
        %v712 = vcosq.f32.pop %v710
        %v713 = vsinq.f32.pop %v710
        %vm714 = vweird.f32 %v618
        %v715 = vadd.s32 %v711, 3
        %v716 = vand.u32 %v715, 3
        %vm717 = vcmp.lt.s32.totalorder %v716, 2
        %vm718 = vcmp.eq.s32.totalorder %v716, 0
        %v719 = vxor.u32 %v713, 2147483648
        %v720 = vsel %vm718, %v712, %v719
        %vm721 = vcmp.eq.s32.totalorder %v716, 2
        %v722 = vxor.u32 %v712, 2147483648
        %v723 = vsel %vm721, %v722, %v713
        %v724 = vsel %vm717, %v720, %v723
        %v725 = vsel %vm714, nan, %v724
        %v726 = vand.u32 2147483647, %v619
        %vm727 = vcmp.le.f32.partialorder %v726, 0.7853982
        %vm728 = vcmp.lt.s32.totalorder %v619, 0
        %v729 = vand.u32 %v619, 2139095040
        %v730 = vshrl.u32 %v729, 23
        %v731 = vsub.s32 %v730, 127
        %v732 = vand.u32 2147483647, %v619
        %v733 = vand.u32 %v732, 8388607
        %v734 = vor.u32 %v733, 8388608
        %v735 = vsub.s32 0, %v734
        %v736 = vadd.s32 %v731, 1
        %vm737 = vcmp.gt.s32.totalorder %v736, 0
        %v738 = vsel %vm737, %v736, 0
        %v739 = vshrl.u32 %v738, 5
        %v740 = vand.u32 %v738, 31
        %v741 = vsub.s32 32, %v740
        %v742 = vshrl.u32 683565275, %v741
        %v743 = vshll.u32 683565275, %v740
        %v744 = vshrl.u32 2475754826, %v741
        %v745 = vor.u32 %v743, %v744
        %v746 = vshll.u32 2475754826, %v740
        %v747 = vshrl.u32 2131351028, %v741
        %v748 = vor.u32 %v746, %v747
        %v749 = vshll.u32 2131351028, %v740
        %v750 = vshrl.u32 2102212464, %v741
        %v751 = vor.u32 %v749, %v750
        %v752 = vshll.u32 2102212464, %v740
        %v753 = vshrl.u32 920167782, %v741
        %v754 = vor.u32 %v752, %v753
        %v755 = vshll.u32 920167782, %v740
        %v756 = vshrl.u32 1326507024, %v741
        %v757 = vor.u32 %v755, %v756
        %vm758 = vcmp.lt.s32.totalorder %v739, 1
        %vm759 = vcmp.lt.s32.totalorder %v739, 2
        %vm760 = vcmp.lt.s32.totalorder %v739, 3
        %vm761 = vcmp.lt.s32.totalorder %v739, 4
        %v762 = vsel %vm758, %v742, %v745
        %v763 = vsel %vm761, %v751, 2102212464
        %v764 = vsel %vm760, %v748, %v763
        %v765 = vsel %vm759, %v762, %v764
        %v766 = vsel %vm758, %v745, %v748
        %v767 = vsel %vm761, %v754, 920167782
        %v768 = vsel %vm760, %v751, %v767
        %v769 = vsel %vm759, %v766, %v768
        %v770 = vsel %vm758, %v748, %v751
        %v771 = vsel %vm761, %v757, 1326507024
        %v772 = vsel %vm760, %v754, %v771
        %v773 = vsel %vm759, %v770, %v772
        %v774 = vshll.u32 %v734, 8
        %v775 = vmul.u32.u64.compose %v774, %v773
        %v776 = vextract.low.u32 %v775
        %v777 = vextract.high.u32 %v775
        %v778 = vmul.u32.u64.compose %v774, %v769
        %v779 = vextract.low.u32 %v778
        %v780 = vextract.high.u32 %v778
        %v781 = vmul.u32 %v774, %v765
        %v782 = vadd.s32 %v777, %v779
        %vm783 = vc.u32 %v777, %v779
        %v784 = vadd.s32 %v780, 1
        %v785 = vsel %vm783, %v784, %v780
        %v786 = vadd.s32 %v781, %v785
        %v787 = vadd.s32 %v786, 536870912
        %v788 = vshrl.u32 %v787, 30
        %v789 = vshll.u32 %v788, 30
        %v790 = vsub.s32 %v786, %v789
        %vm791 = vcmp.lt.s32.totalorder %v790, 0
        %v792 = vsub.s32 0, %v790
        %v793 = vsel %vm791, %v792, %v790
        %v794 = vclz %v793
        %v795 = vsub.s32 %v794, 2
        %vm796 = vcmp.gt.s32.totalorder 0, %v795
        %v797 = vsel %vm796, 0, %v795
        %v798 = vsub.s32 32, %v797
        %v799 = vshll.u32 %v790, %v797
        %v800 = vshrl.u32 %v782, %v798
        %v801 = vor.u32 %v799, %v800
        %v802 = vsub.s32 4294967266, %v797
        %v803 = vadd.s32 %v802, 127
        %v804 = vshll.u32 %v803, 23
        %v805 = vor.u32 4788187, %v804
        %v806 = vand.u32 2147483647, %v805
        %v808 = vcvt.s32.f32 %v801
        %v809 = vmul.f32 %v808, %v806
        %v810 = vxor.u32 %v809, 2147483648
        %v811 = vsel %vm728, %v810, %v809
        %v812 = vsub.s32 4, %v788
        %v813 = vsel %vm728, %v812, %v788
        %v814 = vsel %vm727, %v619, %v811
        %v815 = vsel %vm727, 0, %v813
        %v816 = vcosq.f32.pop %v814
        %v817 = vsinq.f32.pop %v814
        %vm818 = vweird.f32 %v619
        %v819 = vadd.s32 %v815, 3
        %v820 = vand.u32 %v819, 3
        %vm821 = vcmp.lt.s32.totalorder %v820, 2
        %vm822 = vcmp.eq.s32.totalorder %v820, 0
        %v823 = vxor.u32 %v817, 2147483648
        %v824 = vsel %vm822, %v816, %v823
        %vm825 = vcmp.eq.s32.totalorder %v820, 2
        %v826 = vxor.u32 %v816, 2147483648
        %v827 = vsel %vm825, %v826, %v817
        %v828 = vsel %vm821, %v824, %v827
        %v829 = vsel %vm818, nan, %v828
        %v830 = vand.u32 2147483647, %v620
        %vm831 = vcmp.le.f32.partialorder %v830, 0.7853982
        %vm832 = vcmp.lt.s32.totalorder %v620, 0
        %v833 = vand.u32 %v620, 2139095040
        %v834 = vshrl.u32 %v833, 23
        %v835 = vsub.s32 %v834, 127
        %v836 = vand.u32 2147483647, %v620
        %v837 = vand.u32 %v836, 8388607
        %v838 = vor.u32 %v837, 8388608
        %v839 = vsub.s32 0, %v838
        %v840 = vadd.s32 %v835, 1
        %vm841 = vcmp.gt.s32.totalorder %v840, 0
        %v842 = vsel %vm841, %v840, 0
        %v843 = vshrl.u32 %v842, 5
        %v844 = vand.u32 %v842, 31
        %v845 = vsub.s32 32, %v844
        %v846 = vshrl.u32 683565275, %v845
        %v847 = vshll.u32 683565275, %v844
        %v848 = vshrl.u32 2475754826, %v845
        %v849 = vor.u32 %v847, %v848
        %v850 = vshll.u32 2475754826, %v844
        %v851 = vshrl.u32 2131351028, %v845
        %v852 = vor.u32 %v850, %v851
        %v853 = vshll.u32 2131351028, %v844
        %v854 = vshrl.u32 2102212464, %v845
        %v855 = vor.u32 %v853, %v854
        %v856 = vshll.u32 2102212464, %v844
        %v857 = vshrl.u32 920167782, %v845
        %v858 = vor.u32 %v856, %v857
        %v859 = vshll.u32 920167782, %v844
        %v860 = vshrl.u32 1326507024, %v845
        %v861 = vor.u32 %v859, %v860
        %vm862 = vcmp.lt.s32.totalorder %v843, 1
        %vm863 = vcmp.lt.s32.totalorder %v843, 2
        %vm864 = vcmp.lt.s32.totalorder %v843, 3
        %vm865 = vcmp.lt.s32.totalorder %v843, 4
        %v866 = vsel %vm862, %v846, %v849
        %v867 = vsel %vm865, %v855, 2102212464
        %v868 = vsel %vm864, %v852, %v867
        %v869 = vsel %vm863, %v866, %v868
        %v870 = vsel %vm862, %v849, %v852
        %v871 = vsel %vm865, %v858, 920167782
        %v872 = vsel %vm864, %v855, %v871
        %v873 = vsel %vm863, %v870, %v872
        %v874 = vsel %vm862, %v852, %v855
        %v875 = vsel %vm865, %v861, 1326507024
        %v876 = vsel %vm864, %v858, %v875
        %v877 = vsel %vm863, %v874, %v876
        %v878 = vshll.u32 %v838, 8
        %v879 = vmul.u32.u64.compose %v878, %v877
        %v880 = vextract.low.u32 %v879
        %v881 = vextract.high.u32 %v879
        %v882 = vmul.u32.u64.compose %v878, %v873
        %v883 = vextract.low.u32 %v882
        %v884 = vextract.high.u32 %v882
        %v885 = vmul.u32 %v878, %v869
        %v886 = vadd.s32 %v881, %v883
        %vm887 = vc.u32 %v881, %v883
        %v888 = vadd.s32 %v884, 1
        %v889 = vsel %vm887, %v888, %v884
        %v890 = vadd.s32 %v885, %v889
        %v891 = vadd.s32 %v890, 536870912
        %v892 = vshrl.u32 %v891, 30
        %v893 = vshll.u32 %v892, 30
        %v894 = vsub.s32 %v890, %v893
        %vm895 = vcmp.lt.s32.totalorder %v894, 0
        %v896 = vsub.s32 0, %v894
        %v897 = vsel %vm895, %v896, %v894
        %v898 = vclz %v897
        %v899 = vsub.s32 %v898, 2
        %vm900 = vcmp.gt.s32.totalorder 0, %v899
        %v901 = vsel %vm900, 0, %v899
        %v902 = vsub.s32 32, %v901
        %v903 = vshll.u32 %v894, %v901
        %v904 = vshrl.u32 %v886, %v902
        %v905 = vor.u32 %v903, %v904
        %v906 = vsub.s32 4294967266, %v901
        %v907 = vadd.s32 %v906, 127
        %v908 = vshll.u32 %v907, 23
        %v909 = vor.u32 4788187, %v908
        %v910 = vand.u32 2147483647, %v909
        %v912 = vcvt.s32.f32 %v905
        %v913 = vmul.f32 %v912, %v910
        %v914 = vxor.u32 %v913, 2147483648
        %v915 = vsel %vm832, %v914, %v913
        %v916 = vsub.s32 4, %v892
        %v917 = vsel %vm832, %v916, %v892
        %v918 = vsel %vm831, %v620, %v915
        %v919 = vsel %vm831, 0, %v917
        %v920 = vcosq.f32.pop %v918
        %v921 = vsinq.f32.pop %v918
        %vm922 = vweird.f32 %v620
        %v923 = vadd.s32 %v919, 3
        %v924 = vand.u32 %v923, 3
        %vm925 = vcmp.lt.s32.totalorder %v924, 2
        %vm926 = vcmp.eq.s32.totalorder %v924, 0
        %v927 = vxor.u32 %v921, 2147483648
        %v928 = vsel %vm926, %v920, %v927
        %vm929 = vcmp.eq.s32.totalorder %v924, 2
        %v930 = vxor.u32 %v920, 2147483648
        %v931 = vsel %vm929, %v930, %v921
        %v932 = vsel %vm925, %v928, %v931
        %v933 = vsel %vm922, nan, %v932
        %v934 = vand.u32 2147483647, %v621
        %vm935 = vcmp.le.f32.partialorder %v934, 0.7853982
        %vm936 = vcmp.lt.s32.totalorder %v621, 0
        %v937 = vand.u32 %v621, 2139095040
        %v938 = vshrl.u32 %v937, 23
        %v939 = vsub.s32 %v938, 127
        %v940 = vand.u32 2147483647, %v621
        %v941 = vand.u32 %v940, 8388607
        %v942 = vor.u32 %v941, 8388608
        %v943 = vsub.s32 0, %v942
        %v944 = vadd.s32 %v939, 1
        %vm945 = vcmp.gt.s32.totalorder %v944, 0
        %v946 = vsel %vm945, %v944, 0
        %v947 = vshrl.u32 %v946, 5
        %v948 = vand.u32 %v946, 31
        %v949 = vsub.s32 32, %v948
        %v950 = vshrl.u32 683565275, %v949
        %v951 = vshll.u32 683565275, %v948
        %v952 = vshrl.u32 2475754826, %v949
        %v953 = vor.u32 %v951, %v952
        %v954 = vshll.u32 2475754826, %v948
        %v955 = vshrl.u32 2131351028, %v949
        %v956 = vor.u32 %v954, %v955
        %v957 = vshll.u32 2131351028, %v948
        %v958 = vshrl.u32 2102212464, %v949
        %v959 = vor.u32 %v957, %v958
        %v960 = vshll.u32 2102212464, %v948
        %v961 = vshrl.u32 920167782, %v949
        %v962 = vor.u32 %v960, %v961
        %v963 = vshll.u32 920167782, %v948
        %v964 = vshrl.u32 1326507024, %v949
        %v965 = vor.u32 %v963, %v964
        %vm966 = vcmp.lt.s32.totalorder %v947, 1
        %vm967 = vcmp.lt.s32.totalorder %v947, 2
        %vm968 = vcmp.lt.s32.totalorder %v947, 3
        %vm969 = vcmp.lt.s32.totalorder %v947, 4
        %v970 = vsel %vm966, %v950, %v953
        %v971 = vsel %vm969, %v959, 2102212464
        %v972 = vsel %vm968, %v956, %v971
        %v973 = vsel %vm967, %v970, %v972
        %v974 = vsel %vm966, %v953, %v956
        %v975 = vsel %vm969, %v962, 920167782
        %v976 = vsel %vm968, %v959, %v975
        %v977 = vsel %vm967, %v974, %v976
        %v978 = vsel %vm966, %v956, %v959
        %v979 = vsel %vm969, %v965, 1326507024
        %v980 = vsel %vm968, %v962, %v979
        %v981 = vsel %vm967, %v978, %v980
        %v982 = vshll.u32 %v942, 8
        %v983 = vmul.u32.u64.compose %v982, %v981
        %v984 = vextract.low.u32 %v983
        %v985 = vextract.high.u32 %v983
        %v986 = vmul.u32.u64.compose %v982, %v977
        %v987 = vextract.low.u32 %v986
        %v988 = vextract.high.u32 %v986
        %v989 = vmul.u32 %v982, %v973
        %v990 = vadd.s32 %v985, %v987
        %vm991 = vc.u32 %v985, %v987
        %v992 = vadd.s32 %v988, 1
        %v993 = vsel %vm991, %v992, %v988
        %v994 = vadd.s32 %v989, %v993
        %v995 = vadd.s32 %v994, 536870912
        %v996 = vshrl.u32 %v995, 30
        %v997 = vshll.u32 %v996, 30
        %v998 = vsub.s32 %v994, %v997
        %vm999 = vcmp.lt.s32.totalorder %v998, 0
        %v1000 = vsub.s32 0, %v998
        %v1001 = vsel %vm999, %v1000, %v998
        %v1002 = vclz %v1001
        %v1003 = vsub.s32 %v1002, 2
        %vm1004 = vcmp.gt.s32.totalorder 0, %v1003
        %v1005 = vsel %vm1004, 0, %v1003
        %v1006 = vsub.s32 32, %v1005
        %v1007 = vshll.u32 %v998, %v1005
        %v1008 = vshrl.u32 %v990, %v1006
        %v1009 = vor.u32 %v1007, %v1008
        %v1010 = vsub.s32 4294967266, %v1005
        %v1011 = vadd.s32 %v1010, 127
        %v1012 = vshll.u32 %v1011, 23
        %v1013 = vor.u32 4788187, %v1012
        %v1014 = vand.u32 2147483647, %v1013
        %v1016 = vcvt.s32.f32 %v1009
        %v1017 = vmul.f32 %v1016, %v1014
        %v1018 = vxor.u32 %v1017, 2147483648
        %v1019 = vsel %vm936, %v1018, %v1017
        %v1020 = vsub.s32 4, %v996
        %v1021 = vsel %vm936, %v1020, %v996
        %v1022 = vsel %vm935, %v621, %v1019
        %v1023 = vsel %vm935, 0, %v1021
        %v1024 = vcosq.f32.pop %v1022
        %v1025 = vsinq.f32.pop %v1022
        %vm1026 = vweird.f32 %v621
        %v1027 = vadd.s32 %v1023, 3
        %v1028 = vand.u32 %v1027, 3
        %vm1029 = vcmp.lt.s32.totalorder %v1028, 2
        %vm1030 = vcmp.eq.s32.totalorder %v1028, 0
        %v1031 = vxor.u32 %v1025, 2147483648
        %v1032 = vsel %vm1030, %v1024, %v1031
        %vm1033 = vcmp.eq.s32.totalorder %v1028, 2
        %v1034 = vxor.u32 %v1024, 2147483648
        %v1035 = vsel %vm1033, %v1034, %v1025
        %v1036 = vsel %vm1029, %v1032, %v1035
        %v1037 = vsel %vm1026, nan, %v1036
        %v1038 = vpack.c.bf16 %v933, %v725
        %v1039 = vpack.c.bf16 %v1037, %v829
        %v1040 = vld [vmem:[#allocation2] sm:$0xf]
        %v1041 = vld [vmem:[#allocation2 + $0x4] sm:$0xf]
        %v1042 = vld [vmem:[#allocation2 + $0x8] sm:$0xf]
        %v1043 = vld [vmem:[#allocation2 + $0xc] sm:$0xf]
        %v1044 = vld [vmem:[#allocation2 + $0x10] sm:$0xf]
        %v1045 = vld [vmem:[#allocation2 + $0x14] sm:$0xf]
        %v1046 = vld [vmem:[#allocation2 + $0x18] sm:$0xf]
        %v1047 = vld [vmem:[#allocation2 + $0x1c] sm:$0xf]
        %v1048 = vld [vmem:[#allocation2 + $0x20] sm:$0xf]
        %v1049 = vld [vmem:[#allocation2 + $0x24] sm:$0xf]
        %v1050 = vld [vmem:[#allocation2 + $0x28] sm:$0xf]
        %v1051 = vld [vmem:[#allocation2 + $0x2c] sm:$0xf]
        %v1052 = vld [vmem:[#allocation2 + $0x30] sm:$0xf]
        %v1053 = vld [vmem:[#allocation2 + $0x34] sm:$0xf]
        %v1054 = vld [vmem:[#allocation2 + $0x38] sm:$0xf]
        %v1055 = vld [vmem:[#allocation2 + $0x3c] sm:$0xf]
        %v1056 = vld [vmem:[#allocation2 + $0x40] sm:$0xf]
        %v1057 = vld [vmem:[#allocation2 + $0x44] sm:$0xf]
        %v1058 = vld [vmem:[#allocation2 + $0x48] sm:$0xf]
        %v1059 = vld [vmem:[#allocation2 + $0x4c] sm:$0xf]
        %v1060 = vld [vmem:[#allocation2 + $0x50] sm:$0xf]
        %v1061 = vld [vmem:[#allocation2 + $0x54] sm:$0xf]
        %v1062 = vld [vmem:[#allocation2 + $0x58] sm:$0xf]
        %v1063 = vld [vmem:[#allocation2 + $0x5c] sm:$0xf]
        %v1064 = vld [vmem:[#allocation2 + $0x60] sm:$0xf]
        %v1065 = vld [vmem:[#allocation2 + $0x64] sm:$0xf]
        %v1066 = vld [vmem:[#allocation2 + $0x68] sm:$0xf]
        %v1067 = vld [vmem:[#allocation2 + $0x6c] sm:$0xf]
        %v1068 = vld [vmem:[#allocation2 + $0x70] sm:$0xf]
        %v1069 = vld [vmem:[#allocation2 + $0x74] sm:$0xf]
        %v1070 = vld [vmem:[#allocation2 + $0x78] sm:$0xf]
        %v1071 = vld [vmem:[#allocation2 + $0x7c] sm:$0xf]
        %v1072 = vld [vmem:[%s5] sm:$0x1]
        %v1074 = vlaneseq
        %v1075 = vshrl.u32 %v1074, 7
        %v1076 = vsub.s32 0, %v1075
        %v1077 = vrot.slane %v1072, %v1076
        %v1111 = vunpack.c.l.b16 %v1040
        %v1112 = vunpack.c.l.b16 %v1041
        %v1113 = vunpack.c.l.b16 %v1042
        %v1114 = vunpack.c.l.b16 %v1043
        %v1115 = vunpack.c.l.b16 %v1044
        %v1116 = vunpack.c.l.b16 %v1045
        %v1117 = vunpack.c.l.b16 %v1046
        %v1118 = vunpack.c.l.b16 %v1047
        %v1119 = vunpack.c.l.b16 %v1048
        %v1120 = vunpack.c.l.b16 %v1049
        %v1121 = vunpack.c.l.b16 %v1050
        %v1122 = vunpack.c.l.b16 %v1051
        %v1123 = vunpack.c.l.b16 %v1052
        %v1124 = vunpack.c.l.b16 %v1053
        %v1125 = vunpack.c.l.b16 %v1054
        %v1126 = vunpack.c.l.b16 %v1055
        %v1127 = vunpack.c.l.b16 %v1056
        %v1128 = vunpack.c.l.b16 %v1057
        %v1129 = vunpack.c.l.b16 %v1058
        %v1130 = vunpack.c.l.b16 %v1059
        %v1131 = vunpack.c.l.b16 %v1060
        %v1132 = vunpack.c.l.b16 %v1061
        %v1133 = vunpack.c.l.b16 %v1062
        %v1134 = vunpack.c.l.b16 %v1063
        %v1135 = vunpack.c.l.b16 %v1064
        %v1136 = vunpack.c.l.b16 %v1065
        %v1137 = vunpack.c.l.b16 %v1066
        %v1138 = vunpack.c.l.b16 %v1067
        %v1139 = vunpack.c.l.b16 %v1068
        %v1140 = vunpack.c.l.b16 %v1069
        %v1141 = vunpack.c.l.b16 %v1070
        %v1142 = vunpack.c.l.b16 %v1071
        %v1143 = vpack.c.b16 %v1112, %v1111
        %v1144 = vpack.c.b16 %v1114, %v1113
        %v1145 = vpack.c.b16 %v1116, %v1115
        %v1146 = vpack.c.b16 %v1118, %v1117
        %v1147 = vpack.c.b16 %v1120, %v1119
        %v1148 = vpack.c.b16 %v1122, %v1121
        %v1149 = vpack.c.b16 %v1124, %v1123
        %v1150 = vpack.c.b16 %v1126, %v1125
        %v1151 = vpack.c.b16 %v1128, %v1127
        %v1152 = vpack.c.b16 %v1130, %v1129
        %v1153 = vpack.c.b16 %v1132, %v1131
        %v1154 = vpack.c.b16 %v1134, %v1133
        %v1155 = vpack.c.b16 %v1136, %v1135
        %v1156 = vpack.c.b16 %v1138, %v1137
        %v1157 = vpack.c.b16 %v1140, %v1139
        %v1158 = vpack.c.b16 %v1142, %v1141
        %1175 = vmatprep.subr.bf16.mxu0 0
        %1176 = vmatpush1.bf16.msra.mxu0 %v1143
        %1177 = vmatprep.subr.bf16.mxu0 0
        %1178 = vmatpush1.bf16.msra.mxu0 %v1144
        %1179 = vmatprep.subr.bf16.mxu0 0
        %1180 = vmatpush1.bf16.msra.mxu0 %v1145
        %1181 = vmatprep.subr.bf16.mxu0 0
        %1182 = vmatpush1.bf16.msra.mxu0 %v1146
        %1183 = vmatprep.subr.bf16.mxu0 0
        %1184 = vmatpush1.bf16.msra.mxu0 %v1147
        %1185 = vmatprep.subr.bf16.mxu0 0
        %1186 = vmatpush1.bf16.msra.mxu0 %v1148
        %1187 = vmatprep.subr.bf16.mxu0 0
        %1188 = vmatpush1.bf16.msra.mxu0 %v1149
        %1189 = vmatprep.subr.bf16.mxu0 0
        %1190 = vmatpush1.bf16.msra.mxu0 %v1150
        %1191 = vmatprep.subr.bf16.mxu0 0
        %1192 = vmatpush1.bf16.msra.mxu0 %v1151
        %1193 = vmatprep.subr.bf16.mxu0 0
        %1194 = vmatpush1.bf16.msra.mxu0 %v1152
        %1195 = vmatprep.subr.bf16.mxu0 0
        %1196 = vmatpush1.bf16.msra.mxu0 %v1153
        %1197 = vmatprep.subr.bf16.mxu0 0
        %1198 = vmatpush1.bf16.msra.mxu0 %v1154
        %1199 = vmatprep.subr.bf16.mxu0 0
        %1200 = vmatpush1.bf16.msra.mxu0 %v1155
        %1201 = vmatprep.subr.bf16.mxu0 0
        %1202 = vmatpush1.bf16.msra.mxu0 %v1156
        %1203 = vmatprep.subr.bf16.mxu0 0
        %1204 = vmatpush1.bf16.msra.mxu0 %v1157
        %1205 = vmatprep.subr.bf16.mxu0 0
        %1206 = vmatpush1.bf16.msra.mxu0 %v1158
        %1207 = vmatprep.mubr.bf16.mxu0 %v1039
        %1208 = vmatmul.mubr.bf16.gmra.mrb[0].mxu0 %v1038
        %v1209 = vpop.f32.mrb[0].mxu0
        %v1210 = vadd.f32 %v1077, %v1209
        %v1211 = vpop.f32.mrb[0].mxu0
        %v1212 = vpop.f32.mrb[0].mxu0
        %v1213 = vadd.f32 %v1077, %v1212
        %v1214 = vpop.f32.mrb[0].mxu0
        %1215 = vdwg.mxu0
        %v1216 = vmul.f32 %v1210, %v1210
        %v1217 = vmul.f32 %v1213, %v1213
        %v1218 = vmul.f32 %v1210, %v1216
        %v1219 = vmul.f32 %v1213, %v1217
        %v1220 = vmul.f32 %v1218, 0.044715
        %v1221 = vmul.f32 %v1219, 0.044715
        %v1222 = vadd.f32 %v1210, %v1220
        %v1223 = vadd.f32 %v1213, %v1221
        %v1224 = vmul.f32 %v1222, 0.7978846
        %v1225 = vmul.f32 %v1223, 0.7978846
        %v1226 = vtanh.pop %v1224
        %v1227 = vtanh.pop %v1225
        %v1228 = vadd.f32 %v1226, 1.0
        %v1229 = vadd.f32 %v1227, 1.0
        %v1230 = vmul.f32 %v1228, 0.5
        %v1231 = vmul.f32 %v1229, 0.5
        %v1232 = vmul.f32 %v1210, %v1230
        %v1233 = vmul.f32 %v1213, %v1231
        %v1234 = vpack.c.bf16 %v1233, %v1232
        %v1235 = vld [vmem:[%s6] sm:$0xf]
        %v1236 = vld [vmem:[%s6 + $0x4] sm:$0xf]
        %v1237 = vld [vmem:[%s6 + $0x8] sm:$0xf]
        %v1238 = vld [vmem:[%s6 + $0xc] sm:$0xf]
        %v1239 = vld [vmem:[%s6 + $0x10] sm:$0xf]
        %v1240 = vld [vmem:[%s6 + $0x14] sm:$0xf]
        %v1241 = vld [vmem:[%s6 + $0x18] sm:$0xf]
        %v1242 = vld [vmem:[%s6 + $0x1c] sm:$0xf]
        %v1243 = vld [vmem:[%s6 + $0x20] sm:$0xf]
        %v1244 = vld [vmem:[%s6 + $0x24] sm:$0xf]
        %v1245 = vld [vmem:[%s6 + $0x28] sm:$0xf]
        %v1246 = vld [vmem:[%s6 + $0x2c] sm:$0xf]
        %v1247 = vld [vmem:[%s6 + $0x30] sm:$0xf]
        %v1248 = vld [vmem:[%s6 + $0x34] sm:$0xf]
        %v1249 = vld [vmem:[%s6 + $0x38] sm:$0xf]
        %v1250 = vld [vmem:[%s6 + $0x3c] sm:$0xf]
        %v1251 = vld [vmem:[%s574] sm:$0xf]
        %v1252 = vld [vmem:[%s574 + $0x4] sm:$0xf]
        %v1253 = vld [vmem:[%s7] sm:$0xf]
        %v1254 = vld [vmem:[%s7 + $0x4] sm:$0xf]
        %v1257 = vunpack.c.l.b16 %v1251
        %v1258 = vunpack.c.l.b16 %v1252
        %v1259 = vpack.c.b16 %v1258, %v1257
        %v1262 = vunpack.c.l.b16 %v1253
        %v1263 = vunpack.c.l.b16 %v1254
        %v1264 = vpack.c.b16 %v1263, %v1262
        %vm1266 = vcmask 130048
        %v1268 = vsel %vm1266, %v1259, 0
        %1270 = vmatprep.subr.bf16.mxu0 0
        %1271 = vmatpush1.bf16.msra.mxu0 %v1264
        %1272 = vmatprep.subr.bf16.mxu0 0
        %1273 = vmatpush1.bf16.msra.mxu0 0
        %1274 = vmatprep.subr.bf16.mxu0 0
        %1275 = vmatpush1.bf16.msra.mxu0 0
        %1276 = vmatprep.subr.bf16.mxu0 0
        %1277 = vmatpush1.bf16.msra.mxu0 0
        %1278 = vmatprep.subr.bf16.mxu0 0
        %1279 = vmatpush1.bf16.msra.mxu0 0
        %1280 = vmatprep.subr.bf16.mxu0 0
        %1281 = vmatpush1.bf16.msra.mxu0 0
        %1282 = vmatprep.subr.bf16.mxu0 0
        %1283 = vmatpush1.bf16.msra.mxu0 0
        %1284 = vmatprep.subr.bf16.mxu0 0
        %1285 = vmatpush1.bf16.msra.mxu0 0
        %1286 = vmatprep.subr.bf16.mxu0 0
        %1287 = vmatpush1.bf16.msra.mxu0 0
        %1288 = vmatprep.subr.bf16.mxu0 0
        %1289 = vmatpush1.bf16.msra.mxu0 0
        %1290 = vmatprep.subr.bf16.mxu0 0
        %1291 = vmatpush1.bf16.msra.mxu0 0
        %1292 = vmatprep.subr.bf16.mxu0 0
        %1293 = vmatpush1.bf16.msra.mxu0 0
        %1294 = vmatprep.subr.bf16.mxu0 0
        %1295 = vmatpush1.bf16.msra.mxu0 0
        %1296 = vmatprep.subr.bf16.mxu0 0
        %1297 = vmatpush1.bf16.msra.mxu0 0
        %1298 = vmatprep.subr.bf16.mxu0 0
        %1299 = vmatpush1.bf16.msra.mxu0 0
        %1300 = vmatprep.subr.bf16.mxu0 0
        %1301 = vmatpush1.bf16.msra.mxu0 0
        %1302 = vmatprep.mubr.bf16.mxu0 0
        %1303 = vmatmul.mubr.bf16.gmra.mrb[0].mxu0 %v1268
        %v1304 = vpop.f32.mrb[0].mxu0
        %v1305 = vadd.f32 0.0, %v1304
        %v1306 = vpop.f32.mrb[0].mxu0
        %v1307 = vpop.f32.mrb[0].mxu0
        %v1308 = vadd.f32 0.0, %v1307
        %v1309 = vpop.f32.mrb[0].mxu0
        %1310 = vdwg.mxu0
        %v1327 = vunpack.c.l.b16 %v1235
        %v1328 = vunpack.c.l.b16 %v1236
        %v1329 = vunpack.c.l.b16 %v1237
        %v1330 = vunpack.c.l.b16 %v1238
        %v1331 = vunpack.c.l.b16 %v1239
        %v1332 = vunpack.c.l.b16 %v1240
        %v1333 = vunpack.c.l.b16 %v1241
        %v1334 = vunpack.c.l.b16 %v1242
        %v1335 = vunpack.c.l.b16 %v1243
        %v1336 = vunpack.c.l.b16 %v1244
        %v1337 = vunpack.c.l.b16 %v1245
        %v1338 = vunpack.c.l.b16 %v1246
        %v1339 = vunpack.c.l.b16 %v1247
        %v1340 = vunpack.c.l.b16 %v1248
        %v1341 = vunpack.c.l.b16 %v1249
        %v1342 = vunpack.c.l.b16 %v1250
        %v1343 = vpack.c.b16 %v1328, %v1327
        %v1344 = vpack.c.b16 %v1330, %v1329
        %v1345 = vpack.c.b16 %v1332, %v1331
        %v1346 = vpack.c.b16 %v1334, %v1333
        %v1347 = vpack.c.b16 %v1336, %v1335
        %v1348 = vpack.c.b16 %v1338, %v1337
        %v1349 = vpack.c.b16 %v1340, %v1339
        %v1350 = vpack.c.b16 %v1342, %v1341
        %1359 = vmatprep.subr.bf16.mxu0 0
        %1360 = vmatpush1.bf16.msra.mxu0 %v1343
        %1361 = vmatprep.subr.bf16.mxu0 0
        %1362 = vmatpush1.bf16.msra.mxu0 %v1344
        %1363 = vmatprep.subr.bf16.mxu0 0
        %1364 = vmatpush1.bf16.msra.mxu0 %v1345
        %1365 = vmatprep.subr.bf16.mxu0 0
        %1366 = vmatpush1.bf16.msra.mxu0 %v1346
        %1367 = vmatprep.subr.bf16.mxu0 0
        %1368 = vmatpush1.bf16.msra.mxu0 %v1347
        %1369 = vmatprep.subr.bf16.mxu0 0
        %1370 = vmatpush1.bf16.msra.mxu0 %v1348
        %1371 = vmatprep.subr.bf16.mxu0 0
        %1372 = vmatpush1.bf16.msra.mxu0 %v1349
        %1373 = vmatprep.subr.bf16.mxu0 0
        %1374 = vmatpush1.bf16.msra.mxu0 %v1350
        %1375 = vmatprep.subr.bf16.mxu0 0
        %1376 = vmatpush1.bf16.msra.mxu0 0
        %1377 = vmatprep.subr.bf16.mxu0 0
        %1378 = vmatpush1.bf16.msra.mxu0 0
        %1379 = vmatprep.subr.bf16.mxu0 0
        %1380 = vmatpush1.bf16.msra.mxu0 0
        %1381 = vmatprep.subr.bf16.mxu0 0
        %1382 = vmatpush1.bf16.msra.mxu0 0
        %1383 = vmatprep.subr.bf16.mxu0 0
        %1384 = vmatpush1.bf16.msra.mxu0 0
        %1385 = vmatprep.subr.bf16.mxu0 0
        %1386 = vmatpush1.bf16.msra.mxu0 0
        %1387 = vmatprep.subr.bf16.mxu0 0
        %1388 = vmatpush1.bf16.msra.mxu0 0
        %1389 = vmatprep.subr.bf16.mxu0 0
        %1390 = vmatpush1.bf16.msra.mxu0 0
        %1391 = vmatprep.mubr.bf16.mxu0 0
        %1392 = vmatmul.mubr.bf16.gmra.mrb[0].mxu0 %v1234
        %v1393 = vpop.f32.mrb[0].mxu0
        %v1394 = vadd.f32 %v1305, %v1393
        %v1395 = vpop.f32.mrb[0].mxu0
        %v1396 = vpop.f32.mrb[0].mxu0
        %v1397 = vadd.f32 %v1308, %v1396
        %v1398 = vpop.f32.mrb[0].mxu0
        %1399 = vdwg.mxu0
        %v1400 = vld [vmem:[%s8] sm:$0x1]
        %v1402 = vlaneseq
        %v1403 = vshrl.u32 %v1402, 7
        %v1404 = vsub.s32 0, %v1403
        %v1405 = vrot.slane %v1400, %v1404
        %v1407 = vadd.f32 %v1394, %v1405
        %v1408 = vadd.f32 %v1397, %v1405
        %v1409 = vmul.f32 %v1407, %v1407
        %v1410 = vmul.f32 %v1408, %v1408
        %v1411 = vmul.f32 %v1407, %v1409
        %v1412 = vmul.f32 %v1408, %v1410
        %v1413 = vmul.f32 %v1411, 0.044715
        %v1414 = vmul.f32 %v1412, 0.044715
        %v1415 = vadd.f32 %v1407, %v1413
        %v1416 = vadd.f32 %v1408, %v1414
        %v1417 = vmul.f32 %v1415, 0.7978846
        %v1418 = vmul.f32 %v1416, 0.7978846
        %v1419 = vtanh.pop %v1417
        %v1420 = vtanh.pop %v1418
        %v1421 = vadd.f32 %v1419, 1.0
        %v1422 = vadd.f32 %v1420, 1.0
        %v1423 = vmul.f32 %v1421, 0.5
        %v1424 = vmul.f32 %v1422, 0.5
        %v1425 = vmul.f32 %v1407, %v1423
        %v1426 = vmul.f32 %v1408, %v1424
        %v1427 = vpack.c.bf16 %v1426, %v1425
        %v1428 = vld [vmem:[#allocation5] sm:$0xf]
        %v1429 = vld [vmem:[#allocation5 + $0x4] sm:$0xf]
        %v1430 = vld [vmem:[#allocation5 + $0x8] sm:$0xf]
        %v1431 = vld [vmem:[#allocation5 + $0xc] sm:$0xf]
        %v1432 = vld [vmem:[#allocation5 + $0x10] sm:$0xf]
        %v1433 = vld [vmem:[#allocation5 + $0x14] sm:$0xf]
        %v1434 = vld [vmem:[#allocation5 + $0x18] sm:$0xf]
        %v1435 = vld [vmem:[#allocation5 + $0x1c] sm:$0xf]
        %v1436 = vld [vmem:[#allocation5 + $0x20] sm:$0xf]
        %v1437 = vld [vmem:[#allocation5 + $0x24] sm:$0xf]
        %v1438 = vld [vmem:[#allocation5 + $0x28] sm:$0xf]
        %v1439 = vld [vmem:[#allocation5 + $0x2c] sm:$0xf]
        %v1440 = vld [vmem:[#allocation5 + $0x30] sm:$0xf]
        %v1441 = vld [vmem:[#allocation5 + $0x34] sm:$0xf]
        %v1442 = vld [vmem:[#allocation5 + $0x38] sm:$0xf]
        %v1443 = vld [vmem:[#allocation5 + $0x3c] sm:$0xf]
        %v1444 = vld [vmem:[%s10] sm:$0x1]
        %v1446 = vlaneseq
        %v1447 = vshrl.u32 %v1446, 7
        %v1448 = vsub.s32 0, %v1447
        %v1449 = vrot.slane %v1444, %v1448
        %v1467 = vunpack.c.l.b16 %v1428
        %v1468 = vunpack.c.l.b16 %v1429
        %v1469 = vunpack.c.l.b16 %v1430
        %v1470 = vunpack.c.l.b16 %v1431
        %v1471 = vunpack.c.l.b16 %v1432
        %v1472 = vunpack.c.l.b16 %v1433
        %v1473 = vunpack.c.l.b16 %v1434
        %v1474 = vunpack.c.l.b16 %v1435
        %v1475 = vunpack.c.l.b16 %v1436
        %v1476 = vunpack.c.l.b16 %v1437
        %v1477 = vunpack.c.l.b16 %v1438
        %v1478 = vunpack.c.l.b16 %v1439
        %v1479 = vunpack.c.l.b16 %v1440
        %v1480 = vunpack.c.l.b16 %v1441
        %v1481 = vunpack.c.l.b16 %v1442
        %v1482 = vunpack.c.l.b16 %v1443
        %v1483 = vpack.c.b16 %v1468, %v1467
        %v1484 = vpack.c.b16 %v1470, %v1469
        %v1485 = vpack.c.b16 %v1472, %v1471
        %v1486 = vpack.c.b16 %v1474, %v1473
        %v1487 = vpack.c.b16 %v1476, %v1475
        %v1488 = vpack.c.b16 %v1478, %v1477
        %v1489 = vpack.c.b16 %v1480, %v1479
        %v1490 = vpack.c.b16 %v1482, %v1481
        %1499 = vmatprep.subr.bf16.mxu0 0
        %1500 = vmatpush1.bf16.msra.mxu0 %v1483
        %1501 = vmatprep.subr.bf16.mxu0 0
        %1502 = vmatpush1.bf16.msra.mxu0 %v1484
        %1503 = vmatprep.subr.bf16.mxu0 0
        %1504 = vmatpush1.bf16.msra.mxu0 %v1485
        %1505 = vmatprep.subr.bf16.mxu0 0
        %1506 = vmatpush1.bf16.msra.mxu0 %v1486
        %1507 = vmatprep.subr.bf16.mxu0 0
        %1508 = vmatpush1.bf16.msra.mxu0 %v1487
        %1509 = vmatprep.subr.bf16.mxu0 0
        %1510 = vmatpush1.bf16.msra.mxu0 %v1488
        %1511 = vmatprep.subr.bf16.mxu0 0
        %1512 = vmatpush1.bf16.msra.mxu0 %v1489
        %1513 = vmatprep.subr.bf16.mxu0 0
        %1514 = vmatpush1.bf16.msra.mxu0 %v1490
        %1515 = vmatprep.subr.bf16.mxu0 0
        %1516 = vmatpush1.bf16.msra.mxu0 0
        %1517 = vmatprep.subr.bf16.mxu0 0
        %1518 = vmatpush1.bf16.msra.mxu0 0
        %1519 = vmatprep.subr.bf16.mxu0 0
        %1520 = vmatpush1.bf16.msra.mxu0 0
        %1521 = vmatprep.subr.bf16.mxu0 0
        %1522 = vmatpush1.bf16.msra.mxu0 0
        %1523 = vmatprep.subr.bf16.mxu0 0
        %1524 = vmatpush1.bf16.msra.mxu0 0
        %1525 = vmatprep.subr.bf16.mxu0 0
        %1526 = vmatpush1.bf16.msra.mxu0 0
        %1527 = vmatprep.subr.bf16.mxu0 0
        %1528 = vmatpush1.bf16.msra.mxu0 0
        %1529 = vmatprep.subr.bf16.mxu0 0
        %1530 = vmatpush1.bf16.msra.mxu0 0
        %1531 = vmatprep.mubr.bf16.mxu0 0
        %1532 = vmatmul.mubr.bf16.gmra.mrb[0].mxu0 %v1427
        %v1533 = vpop.f32.mrb[0].mxu0
        %v1534 = vadd.f32 %v1449, %v1533
        %v1535 = vpop.f32.mrb[0].mxu0
        %v1536 = vpop.f32.mrb[0].mxu0
        %v1537 = vadd.f32 %v1449, %v1536
        %v1538 = vpop.f32.mrb[0].mxu0
        %1539 = vdwg.mxu0
        %v1540 = vmul.f32 %v1534, %v1534
        %v1541 = vmul.f32 %v1537, %v1537
        %v1542 = vmul.f32 %v1534, %v1540
        %v1543 = vmul.f32 %v1537, %v1541
        %v1544 = vmul.f32 %v1542, 0.044715
        %v1545 = vmul.f32 %v1543, 0.044715
        %v1546 = vadd.f32 %v1534, %v1544
        %v1547 = vadd.f32 %v1537, %v1545
        %v1548 = vmul.f32 %v1546, 0.7978846
        %v1549 = vmul.f32 %v1547, 0.7978846
        %v1550 = vtanh.pop %v1548
        %v1551 = vtanh.pop %v1549
        %v1552 = vadd.f32 %v1550, 1.0
        %v1553 = vadd.f32 %v1551, 1.0
        %v1554 = vmul.f32 %v1552, 0.5
        %v1555 = vmul.f32 %v1553, 0.5
        %v1556 = vmul.f32 %v1534, %v1554
        %v1557 = vmul.f32 %v1537, %v1555
        %v1558 = vpack.c.bf16 %v1557, %v1556
        %v1559 = vld [vmem:[#allocation7] sm:$0xf]
        %v1560 = vld [vmem:[#allocation7 + $0x4] sm:$0xf]
        %v1561 = vld [vmem:[#allocation7 + $0x8] sm:$0xf]
        %v1562 = vld [vmem:[#allocation7 + $0xc] sm:$0xf]
        %v1563 = vld [vmem:[#allocation7 + $0x10] sm:$0xf]
        %v1564 = vld [vmem:[#allocation7 + $0x14] sm:$0xf]
        %v1565 = vld [vmem:[#allocation7 + $0x18] sm:$0xf]
        %v1566 = vld [vmem:[#allocation7 + $0x1c] sm:$0xf]
        %v1567 = vld [vmem:[#allocation7 + $0x20] sm:$0xf]
        %v1568 = vld [vmem:[#allocation7 + $0x24] sm:$0xf]
        %v1569 = vld [vmem:[#allocation7 + $0x28] sm:$0xf]
        %v1570 = vld [vmem:[#allocation7 + $0x2c] sm:$0xf]
        %v1571 = vld [vmem:[#allocation7 + $0x30] sm:$0xf]
        %v1572 = vld [vmem:[#allocation7 + $0x34] sm:$0xf]
        %v1573 = vld [vmem:[#allocation7 + $0x38] sm:$0xf]
        %v1574 = vld [vmem:[#allocation7 + $0x3c] sm:$0xf]
        %v1575 = vld [vmem:[%s12] sm:$0x1]
        %v1577 = vlaneseq
        %v1578 = vshrl.u32 %v1577, 7
        %v1579 = vsub.s32 0, %v1578
        %v1580 = vrot.slane %v1575, %v1579
        %v1598 = vunpack.c.l.b16 %v1559
        %v1599 = vunpack.c.l.b16 %v1560
        %v1600 = vunpack.c.l.b16 %v1561
        %v1601 = vunpack.c.l.b16 %v1562
        %v1602 = vunpack.c.l.b16 %v1563
        %v1603 = vunpack.c.l.b16 %v1564
        %v1604 = vunpack.c.l.b16 %v1565
        %v1605 = vunpack.c.l.b16 %v1566
        %v1606 = vunpack.c.l.b16 %v1567
        %v1607 = vunpack.c.l.b16 %v1568
        %v1608 = vunpack.c.l.b16 %v1569
        %v1609 = vunpack.c.l.b16 %v1570
        %v1610 = vunpack.c.l.b16 %v1571
        %v1611 = vunpack.c.l.b16 %v1572
        %v1612 = vunpack.c.l.b16 %v1573
        %v1613 = vunpack.c.l.b16 %v1574
        %v1614 = vpack.c.b16 %v1599, %v1598
        %v1615 = vpack.c.b16 %v1601, %v1600
        %v1616 = vpack.c.b16 %v1603, %v1602
        %v1617 = vpack.c.b16 %v1605, %v1604
        %v1618 = vpack.c.b16 %v1607, %v1606
        %v1619 = vpack.c.b16 %v1609, %v1608
        %v1620 = vpack.c.b16 %v1611, %v1610
        %v1621 = vpack.c.b16 %v1613, %v1612
        %1630 = vmatprep.subr.bf16.mxu0 0
        %1631 = vmatpush1.bf16.msra.mxu0 %v1614
        %1632 = vmatprep.subr.bf16.mxu0 0
        %1633 = vmatpush1.bf16.msra.mxu0 %v1615
        %1634 = vmatprep.subr.bf16.mxu0 0
        %1635 = vmatpush1.bf16.msra.mxu0 %v1616
        %1636 = vmatprep.subr.bf16.mxu0 0
        %1637 = vmatpush1.bf16.msra.mxu0 %v1617
        %1638 = vmatprep.subr.bf16.mxu0 0
        %1639 = vmatpush1.bf16.msra.mxu0 %v1618
        %1640 = vmatprep.subr.bf16.mxu0 0
        %1641 = vmatpush1.bf16.msra.mxu0 %v1619
        %1642 = vmatprep.subr.bf16.mxu0 0
        %1643 = vmatpush1.bf16.msra.mxu0 %v1620
        %1644 = vmatprep.subr.bf16.mxu0 0
        %1645 = vmatpush1.bf16.msra.mxu0 %v1621
        %1646 = vmatprep.subr.bf16.mxu0 0
        %1647 = vmatpush1.bf16.msra.mxu0 0
        %1648 = vmatprep.subr.bf16.mxu0 0
        %1649 = vmatpush1.bf16.msra.mxu0 0
        %1650 = vmatprep.subr.bf16.mxu0 0
        %1651 = vmatpush1.bf16.msra.mxu0 0
        %1652 = vmatprep.subr.bf16.mxu0 0
        %1653 = vmatpush1.bf16.msra.mxu0 0
        %1654 = vmatprep.subr.bf16.mxu0 0
        %1655 = vmatpush1.bf16.msra.mxu0 0
        %1656 = vmatprep.subr.bf16.mxu0 0
        %1657 = vmatpush1.bf16.msra.mxu0 0
        %1658 = vmatprep.subr.bf16.mxu0 0
        %1659 = vmatpush1.bf16.msra.mxu0 0
        %1660 = vmatprep.subr.bf16.mxu0 0
        %1661 = vmatpush1.bf16.msra.mxu0 0
        %1662 = vmatprep.mubr.bf16.mxu0 0
        %1663 = vmatmul.mubr.bf16.gmra.mrb[0].mxu0 %v1558
        %v1664 = vpop.f32.mrb[0].mxu0
        %v1665 = vadd.f32 %v1580, %v1664
        %v1666 = vpop.f32.mrb[0].mxu0
        %v1667 = vpop.f32.mrb[0].mxu0
        %v1668 = vadd.f32 %v1580, %v1667
        %v1669 = vpop.f32.mrb[0].mxu0
        %1670 = vdwg.mxu0
        %v1671 = vmul.f32 %v1665, %v1665
        %v1672 = vmul.f32 %v1668, %v1668
        %v1673 = vmul.f32 %v1665, %v1671
        %v1674 = vmul.f32 %v1668, %v1672
        %v1675 = vmul.f32 %v1673, 0.044715
        %v1676 = vmul.f32 %v1674, 0.044715
        %v1677 = vadd.f32 %v1665, %v1675
        %v1678 = vadd.f32 %v1668, %v1676
        %v1679 = vmul.f32 %v1677, 0.7978846
        %v1680 = vmul.f32 %v1678, 0.7978846
        %v1681 = vtanh.pop %v1679
        %v1682 = vtanh.pop %v1680
        %v1683 = vadd.f32 %v1681, 1.0
        %v1684 = vadd.f32 %v1682, 1.0
        %v1685 = vmul.f32 %v1683, 0.5
        %v1686 = vmul.f32 %v1684, 0.5
        %v1687 = vmul.f32 %v1665, %v1685
        %v1688 = vmul.f32 %v1668, %v1686
        %v1689 = vpack.c.bf16 %v1688, %v1687
        %v1690 = vld [vmem:[#allocation8] sm:$0xf]
        %v1691 = vld [vmem:[#allocation8 + $0x4] sm:$0xf]
        %v1692 = vld [vmem:[#allocation8 + $0x8] sm:$0xf]
        %v1693 = vld [vmem:[#allocation8 + $0xc] sm:$0xf]
        %v1694 = vld [vmem:[#allocation8 + $0x10] sm:$0xf]
        %v1695 = vld [vmem:[#allocation8 + $0x14] sm:$0xf]
        %v1696 = vld [vmem:[#allocation8 + $0x18] sm:$0xf]
        %v1697 = vld [vmem:[#allocation8 + $0x1c] sm:$0xf]
        %v1698 = vld [vmem:[#allocation8 + $0x20] sm:$0xf]
        %v1699 = vld [vmem:[#allocation8 + $0x24] sm:$0xf]
        %v1700 = vld [vmem:[#allocation8 + $0x28] sm:$0xf]
        %v1701 = vld [vmem:[#allocation8 + $0x2c] sm:$0xf]
        %v1702 = vld [vmem:[#allocation8 + $0x30] sm:$0xf]
        %v1703 = vld [vmem:[#allocation8 + $0x34] sm:$0xf]
        %v1704 = vld [vmem:[#allocation8 + $0x38] sm:$0xf]
        %v1705 = vld [vmem:[#allocation8 + $0x3c] sm:$0xf]
        %v1706 = vld [vmem:[%s14] sm:$0x1]
        %v1708 = vlaneseq
        %v1709 = vshrl.u32 %v1708, 7
        %v1710 = vsub.s32 0, %v1709
        %v1711 = vrot.slane %v1706, %v1710
        %v1729 = vunpack.c.l.b16 %v1690
        %v1730 = vunpack.c.l.b16 %v1691
        %v1731 = vunpack.c.l.b16 %v1692
        %v1732 = vunpack.c.l.b16 %v1693
        %v1733 = vunpack.c.l.b16 %v1694
        %v1734 = vunpack.c.l.b16 %v1695
        %v1735 = vunpack.c.l.b16 %v1696
        %v1736 = vunpack.c.l.b16 %v1697
        %v1737 = vunpack.c.l.b16 %v1698
        %v1738 = vunpack.c.l.b16 %v1699
        %v1739 = vunpack.c.l.b16 %v1700
        %v1740 = vunpack.c.l.b16 %v1701
        %v1741 = vunpack.c.l.b16 %v1702
        %v1742 = vunpack.c.l.b16 %v1703
        %v1743 = vunpack.c.l.b16 %v1704
        %v1744 = vunpack.c.l.b16 %v1705
        %v1745 = vpack.c.b16 %v1730, %v1729
        %v1746 = vpack.c.b16 %v1732, %v1731
        %v1747 = vpack.c.b16 %v1734, %v1733
        %v1748 = vpack.c.b16 %v1736, %v1735
        %v1749 = vpack.c.b16 %v1738, %v1737
        %v1750 = vpack.c.b16 %v1740, %v1739
        %v1751 = vpack.c.b16 %v1742, %v1741
        %v1752 = vpack.c.b16 %v1744, %v1743
        %1761 = vmatprep.subr.bf16.mxu0 0
        %1762 = vmatpush1.bf16.msra.mxu0 %v1745
        %1763 = vmatprep.subr.bf16.mxu0 0
        %1764 = vmatpush1.bf16.msra.mxu0 %v1746
        %1765 = vmatprep.subr.bf16.mxu0 0
        %1766 = vmatpush1.bf16.msra.mxu0 %v1747
        %1767 = vmatprep.subr.bf16.mxu0 0
        %1768 = vmatpush1.bf16.msra.mxu0 %v1748
        %1769 = vmatprep.subr.bf16.mxu0 0
        %1770 = vmatpush1.bf16.msra.mxu0 %v1749
        %1771 = vmatprep.subr.bf16.mxu0 0
        %1772 = vmatpush1.bf16.msra.mxu0 %v1750
        %1773 = vmatprep.subr.bf16.mxu0 0
        %1774 = vmatpush1.bf16.msra.mxu0 %v1751
        %1775 = vmatprep.subr.bf16.mxu0 0
        %1776 = vmatpush1.bf16.msra.mxu0 %v1752
        %1777 = vmatprep.subr.bf16.mxu0 0
        %1778 = vmatpush1.bf16.msra.mxu0 0
        %1779 = vmatprep.subr.bf16.mxu0 0
        %1780 = vmatpush1.bf16.msra.mxu0 0
        %1781 = vmatprep.subr.bf16.mxu0 0
        %1782 = vmatpush1.bf16.msra.mxu0 0
        %1783 = vmatprep.subr.bf16.mxu0 0
        %1784 = vmatpush1.bf16.msra.mxu0 0
        %1785 = vmatprep.subr.bf16.mxu0 0
        %1786 = vmatpush1.bf16.msra.mxu0 0
        %1787 = vmatprep.subr.bf16.mxu0 0
        %1788 = vmatpush1.bf16.msra.mxu0 0
        %1789 = vmatprep.subr.bf16.mxu0 0
        %1790 = vmatpush1.bf16.msra.mxu0 0
        %1791 = vmatprep.subr.bf16.mxu0 0
        %1792 = vmatpush1.bf16.msra.mxu0 0
        %1793 = vmatprep.mubr.bf16.mxu0 0
        %1794 = vmatmul.mubr.bf16.gmra.mrb[0].mxu0 %v1689
        %v1795 = vpop.f32.mrb[0].mxu0
        %v1796 = vadd.f32 %v1711, %v1795
        %v1797 = vpop.f32.mrb[0].mxu0
        %v1798 = vpop.f32.mrb[0].mxu0
        %v1799 = vadd.f32 %v1711, %v1798
        %v1800 = vpop.f32.mrb[0].mxu0
        %1801 = vdwg.mxu0
        %v1802 = vpack.c.bf16 %v1799, %v1796
        %v1804 = vunpack.c.l.b16 %v1802
        %v1805 = vunpack.c.h.b16 %v1802
        %v1806 = vpack.c.b16 %v1804, %v1804
        %v1807 = vpack.c.b16 %v1805, %v1805
        %1810 = vst [vmem:[%s563] sm:$0xf] %v1806
        %1811 = vst [vmem:[%s563 + $0x4] sm:$0xf] %v1807
        %s1812 = sand.u32 %s365, 1
        %s1813 = scalar_lea.sflag [#allocation4], %s1812
        %s1814 = sand.u32 %s365, 1
        %s1815 = smul.addr %s1814, 8
        %s1816 = scalar_lea.vmem [#allocation10], %s1815
        // Predicated region
        $region97: #{tpu_custom_call.1} parent=79 // pred_check
          %p1817 = pneg %p375
        $region98: #{tpu_custom_call.1} parent=79 // pred_check_branch
          %1819 = sbr.rel (%p1817) target = $region100
        $region99: #{tpu_custom_call.1} parent=79 // pred_region
          %s1820 = smul.u32 2, %s32
          %s1822 = ssub.s32 128, 128
          %1823 = vsyncadd %s1813, %s1822
          %s1824 = smul.addr %s1820, 64
          %s1825 = scalar_lea.hbm %s15, %s1824
          %s1826 = sshll.u32 %s1816, 4
          %s1827 = int_to_ptr.vmem [resolvable:$true] %s1826
          %1832 = dma.vmem_to_hbm [thread:$0]  %s1827, 128, %s1825, %s1813, 64, 64, 4
        $region100: #{tpu_custom_call.1} parent=79 // pred_fallthru
          _
      $region80: #{tpu_custom_call.1} parent=5 // pred_fallthru
        _
      %p1833 = scmp.le.s32.totalorder 2, %s27
      // Predicated region
      $region101: #{tpu_custom_call.1} parent=5 // pred_check
        %p1834 = pneg %p1833
      $region102: #{tpu_custom_call.1} parent=5 // pred_check_branch
        %1836 = sbr.rel (%p1834) target = $region104
      $region103: #{tpu_custom_call.1} parent=5 // pred_region
        %s1837 = ssub.s32 %s27, 2
        // Predicated region
        $region105: #{tpu_custom_call.1} parent=103 // pred_check
          %p1838 = pneg %p381
        $region106: #{tpu_custom_call.1} parent=103 // pred_check_branch
          %1840 = sbr.rel (%p1838) target = $region108
        $region107: #{tpu_custom_call.1} parent=103 // pred_region
          %s1841 = sand.u32 %s366, 1
          %s1842 = scalar_lea.sflag [#allocation4], %s1841
          %s1843 = sand.u32 %s366, 1
          %s1844 = smul.addr %s1843, 8
          %s1845 = scalar_lea.vmem [#allocation10], %s1844
          %1846 = dma.done %s1842, 128
        $region108: #{tpu_custom_call.1} parent=103 // pred_fallthru
          _
      $region104: #{tpu_custom_call.1} parent=5 // pred_fallthru
        _
    $region6: #{tpu_custom_call.1} parent=1 // loop_footer
      %s31 = sadd.s32 1, %s27
    $region7: #{tpu_custom_call.1} parent=1 // loop_footer_branch
      %26 = sbr.rel target = $region3
    $region8: #{tpu_custom_call.1} parent=1 // loop_exit
      _
    %1847 = vsyncpa [#allocation3], 1
    %s1848 = scalar_lea.sflag [#allocation3], 1
    %1849 = vsyncpa %s1848, 1
    %1850 = vsyncpa [#allocation6], 1
    %1851 = vsyncpa [#allocation9], 1
    %1852 = vsyncpa [#allocation4], 1
    %s1853 = scalar_lea.sflag [#allocation4], 1
    %1854 = vsyncpa %s1853, 1

</llo_original>
